<compile_context>
chip_gen: v6e
topology: v6e:2x2x1
jax: 0.10.0
libtpu: 0.0.40
codegen_flags: <defaults>
</compile_context>

<pallas_src>
import jax
import jax.numpy as jnp
import numpy as np
from jax.experimental import pallas as pl
from jax.experimental.pallas import tpu as pltpu


def _tensor_sum_kernel(x_ref, mw_ref, mht_ref, mct_ref, o_ref):
    # x_ref   : (1, C*H, W)      VMEM  (one batch image, channel*row fused)
    # mw_ref  : (T, W, Wo)       VMEM
    # mht_ref : (T, Ho, H)       VMEM  (Mh pre-transposed in the wrapper)
    # mct_ref : (T, Co, C)       VMEM  (Mc pre-transposed in the wrapper)
    # o_ref   : (1, Co, Ho*Wo)   VMEM  (lane-dense output, written once)
    T = mw_ref.shape[0]
    Wo = mw_ref.shape[2]
    Ho, H = mht_ref.shape[1], mht_ref.shape[2]
    Co, C = mct_ref.shape[1], mct_ref.shape[2]

    x2d = x_ref[0]                                   # (C*H, W)
    acc = jnp.zeros((Co, Ho * Wo), jnp.float32)

    for t in range(T):                               # T = 3, fully unrolled
        mw_t = mw_ref[t]                             # (W, Wo)
        mht_t = mht_ref[t]                           # (Ho, H)
        mct_t = mct_ref[t]                           # (Co, C)

        # W-mode contraction: all channels in one MXU matmul.
        t1 = jnp.dot(x2d, mw_t,
                     preferred_element_type=jnp.float32)              # (C*H, Wo)
        t1 = t1.reshape(C, H, Wo)                    # split leading dim (layout-preserving)

        # H-mode contraction: single batched MXU matmul over channels.
        mh_b = jnp.broadcast_to(mht_t[None, :, :], (C, Ho, H))
        y = jnp.einsum('bij,bjk->bik', mh_b, t1,
                       preferred_element_type=jnp.float32)            # (C, Ho, Wo)

        # C-mode contraction: one MXU matmul on a lane-dense (C, Ho*Wo) tile.
        y2d = y.reshape(C, Ho * Wo)                                   # (C, Ho*Wo)
        acc = acc + jnp.dot(mct_t, y2d,
                            preferred_element_type=jnp.float32)       # (Co, Ho*Wo)

    o_ref[0] = acc                                   # single lane-dense store


def tensor_sum_efficient_ein(x, mw, mh, mc):
    """x: (B, C, H, W) f32; mw: (T, W, Wo); mh: (T, H, Ho); mc: (T, C, Co)."""
    B, C, H, W = x.shape
    T, _, Wo = mw.shape
    Ho = mh.shape[2]
    Co = mc.shape[2]

    # Wrapper-side glue (free XLA reshapes/transposes of parameters):
    x2 = x.astype(jnp.float32).reshape(B, C * H, W)          # (B, C*H, W)
    mw_f = mw.astype(jnp.float32)                            # (T, W, Wo)
    mht = jnp.swapaxes(mh.astype(jnp.float32), 1, 2)         # (T, Ho, H)
    mct = jnp.swapaxes(mc.astype(jnp.float32), 1, 2)         # (T, Co, C)

    out_flat = pl.pallas_call(
        _tensor_sum_kernel,
        out_shape=jax.ShapeDtypeStruct((B, Co, Ho * Wo), jnp.float32),
        grid_spec=pltpu.PrefetchScalarGridSpec(
            num_scalar_prefetch=0,
            grid=(B,),
            in_specs=[
                pl.BlockSpec((1, C * H, W), lambda b: (b, 0, 0)),
                pl.BlockSpec((T, W, Wo), lambda b: (0, 0, 0)),
                pl.BlockSpec((T, Ho, H), lambda b: (0, 0, 0)),
                pl.BlockSpec((T, Co, C), lambda b: (0, 0, 0)),
            ],
            out_specs=pl.BlockSpec((1, Co, Ho * Wo), lambda b: (b, 0, 0)),
        ),
        compiler_params=pltpu.CompilerParams(
            dimension_semantics=("parallel",)),
    )(x2, mw_f, mht, mct)

    return out_flat.reshape(B, Co, Ho, Wo)


if __name__ == "__main__":
    # Small shapes consistent with the module's forward (B, C, H, W image).
    B, C, H, W = 2, 4, 16, 16
    T = 3
    in_shape = [C, H, W]
    out_shape = [C, H, W]          # Co, Ho, Wo
    init_temperature = 2.0
    N = len(in_shape)
    scale_factor = init_temperature ** (1.0 / N)

    key = jax.random.PRNGKey(0)
    kx, kw, kh, kc = jax.random.split(key, 4)

    # Deterministic parameter init mirroring init_tensors():
    #   randn(T, in_i, out_i) / (scale_factor * sqrt(out_i)), stored reversed,
    # so matrices[0] acts on W, matrices[1] on H, matrices[2] on C.
    mw = jax.random.normal(kw, (T, W, out_shape[2]), jnp.float32) / (
        scale_factor * jnp.sqrt(jnp.float32(out_shape[2])))
    mh = jax.random.normal(kh, (T, H, out_shape[1]), jnp.float32) / (
        scale_factor * jnp.sqrt(jnp.float32(out_shape[1])))
    mc = jax.random.normal(kc, (T, C, out_shape[0]), jnp.float32) / (
        scale_factor * jnp.sqrt(jnp.float32(out_shape[0])))

    x = jax.random.normal(kx, (B, C, H, W), jnp.float32)

    out = tensor_sum_efficient_ein(x, mw, mh, mc)
    out = jax.block_until_ready(out)

    # Reference: einsum('btchw,twW,thH,tcC->btCHW').sum(dim=1).
    ref = np.einsum(
        'bchw,twW,thH,tcC->bCHW',
        np.asarray(x), np.asarray(mw), np.asarray(mh), np.asarray(mc))

    assert out.shape == (B, out_shape[0], out_shape[1], out_shape[2])
    np.testing.assert_allclose(np.asarray(out), ref, rtol=2e-3, atol=2e-3)
    print("KERNEL_OK")
</pallas_src>

<mosaic_0001>
module attributes {stable_mosaic.version = 11 : i64} {
  func.func @_tensor_sum_kernel(%arg0: i32, %arg1: memref<1x64x16xf32, #tpu.memory_space<vmem>>, %arg2: memref<3x16x16xf32, #tpu.memory_space<vmem>>, %arg3: memref<3x16x16xf32, #tpu.memory_space<vmem>>, %arg4: memref<3x4x4xf32, #tpu.memory_space<vmem>>, %arg5: memref<1x4x256xf32, #tpu.memory_space<vmem>>) attributes {dimension_semantics = [#tpu.dimension_semantics<parallel>], iteration_bounds = array<i64: 2>, scalar_prefetch = 0 : i64, scratch_operands = 0 : i64, tpu.core_type = #tpu.core_type<tc>, window_params = [{transform_indices = @transform_0, window_bounds = array<i64: 1, 64, 16>}, {pipeline_mode = #tpu.pipeline_mode<synchronous>, transform_indices = @transform_1, window_bounds = array<i64: 3, 16, 16>}, {pipeline_mode = #tpu.pipeline_mode<synchronous>, transform_indices = @transform_2, window_bounds = array<i64: 3, 16, 16>}, {pipeline_mode = #tpu.pipeline_mode<synchronous>, transform_indices = @transform_3, window_bounds = array<i64: 3, 4, 4>}, {transform_indices = @transform_4, window_bounds = array<i64: 1, 4, 256>}]} {
    %c0 = arith.constant 0 : index
    %c0_0 = arith.constant 0 : index
    %c0_1 = arith.constant 0 : index
    %0 = vector.load %arg1[%c0, %c0_0, %c0_1] : memref<1x64x16xf32, #tpu.memory_space<vmem>>, vector<1x64x16xf32>
    %1 = vector.shape_cast %0 : vector<1x64x16xf32> to vector<64x16xf32>
    %cst = arith.constant 0.000000e+00 : f32
    %2 = vector.broadcast %cst : f32 to vector<4x256xf32>
    %c0_2 = arith.constant 0 : index
    %c0_3 = arith.constant 0 : index
    %c0_4 = arith.constant 0 : index
    %3 = vector.load %arg2[%c0_2, %c0_3, %c0_4] : memref<3x16x16xf32, #tpu.memory_space<vmem>>, vector<1x16x16xf32>
    %4 = vector.shape_cast %3 : vector<1x16x16xf32> to vector<16x16xf32>
    %c0_5 = arith.constant 0 : index
    %c0_6 = arith.constant 0 : index
    %c0_7 = arith.constant 0 : index
    %5 = vector.load %arg3[%c0_5, %c0_6, %c0_7] : memref<3x16x16xf32, #tpu.memory_space<vmem>>, vector<1x16x16xf32>
    %6 = vector.shape_cast %5 : vector<1x16x16xf32> to vector<16x16xf32>
    %c0_8 = arith.constant 0 : index
    %c0_9 = arith.constant 0 : index
    %c0_10 = arith.constant 0 : index
    %7 = vector.load %arg4[%c0_8, %c0_9, %c0_10] : memref<3x4x4xf32, #tpu.memory_space<vmem>>, vector<1x4x4xf32>
    %8 = vector.shape_cast %7 : vector<1x4x4xf32> to vector<4x4xf32>
    %cst_11 = arith.constant dense<0.000000e+00> : vector<64x16xf32>
    %9 = tpu.matmul %1, %4, %cst_11 {dimension_numbers = #tpu.dot_dimension_numbers<[1], [0], [0], [1], [0, 0, 1, 1], [], []>} : vector<64x16xf32>, vector<16x16xf32>, vector<64x16xf32> -> vector<64x16xf32>
    %10 = vector.shape_cast %9 : vector<64x16xf32> to vector<4x16x16xf32>
    %11 = vector.shape_cast %6 : vector<16x16xf32> to vector<1x16x16xf32>
    %12 = vector.shape_cast %11 : vector<1x16x16xf32> to vector<1x16x16xf32>
    %13 = vector.broadcast %12 : vector<1x16x16xf32> to vector<4x16x16xf32>
    "tpu.trace_start"() <{level = 10 : i32, message = "bij,bjk->bik"}> : () -> ()
    %cst_12 = arith.constant dense<0.000000e+00> : vector<4x16x16xf32>
    %14 = tpu.matmul %13, %10, %cst_12 {dimension_numbers = #tpu.dot_dimension_numbers<[2], [1], [1], [2], [0, 0, 0, 1, 1, 2], [0], [0]>} : vector<4x16x16xf32>, vector<4x16x16xf32>, vector<4x16x16xf32> -> vector<4x16x16xf32>
    "tpu.trace_stop"() : () -> ()
    %15 = vector.shape_cast %14 : vector<4x16x16xf32> to vector<4x256xf32>
    %cst_13 = arith.constant dense<0.000000e+00> : vector<4x256xf32>
    %16 = tpu.matmul %8, %15, %cst_13 {dimension_numbers = #tpu.dot_dimension_numbers<[1], [0], [0], [1], [0, 0, 1, 1], [], []>} : vector<4x4xf32>, vector<4x256xf32>, vector<4x256xf32> -> vector<4x256xf32>
    %17 = arith.addf %2, %16 : vector<4x256xf32>
    %c1 = arith.constant 1 : index
    %c0_14 = arith.constant 0 : index
    %c0_15 = arith.constant 0 : index
    %18 = vector.load %arg2[%c1, %c0_14, %c0_15] : memref<3x16x16xf32, #tpu.memory_space<vmem>>, vector<1x16x16xf32>
    %19 = vector.shape_cast %18 : vector<1x16x16xf32> to vector<16x16xf32>
    %c1_16 = arith.constant 1 : index
    %c0_17 = arith.constant 0 : index
    %c0_18 = arith.constant 0 : index
    %20 = vector.load %arg3[%c1_16, %c0_17, %c0_18] : memref<3x16x16xf32, #tpu.memory_space<vmem>>, vector<1x16x16xf32>
    %21 = vector.shape_cast %20 : vector<1x16x16xf32> to vector<16x16xf32>
    %c1_19 = arith.constant 1 : index
    %c0_20 = arith.constant 0 : index
    %c0_21 = arith.constant 0 : index
    %22 = vector.load %arg4[%c1_19, %c0_20, %c0_21] : memref<3x4x4xf32, #tpu.memory_space<vmem>>, vector<1x4x4xf32>
    %23 = vector.shape_cast %22 : vector<1x4x4xf32> to vector<4x4xf32>
    %cst_22 = arith.constant dense<0.000000e+00> : vector<64x16xf32>
    %24 = tpu.matmul %1, %19, %cst_22 {dimension_numbers = #tpu.dot_dimension_numbers<[1], [0], [0], [1], [0, 0, 1, 1], [], []>} : vector<64x16xf32>, vector<16x16xf32>, vector<64x16xf32> -> vector<64x16xf32>
    %25 = vector.shape_cast %24 : vector<64x16xf32> to vector<4x16x16xf32>
    %26 = vector.shape_cast %21 : vector<16x16xf32> to vector<1x16x16xf32>
    %27 = vector.shape_cast %26 : vector<1x16x16xf32> to vector<1x16x16xf32>
    %28 = vector.broadcast %27 : vector<1x16x16xf32> to vector<4x16x16xf32>
    "tpu.trace_start"() <{level = 10 : i32, message = "bij,bjk->bik"}> : () -> ()
    %cst_23 = arith.constant dense<0.000000e+00> : vector<4x16x16xf32>
    %29 = tpu.matmul %28, %25, %cst_23 {dimension_numbers = #tpu.dot_dimension_numbers<[2], [1], [1], [2], [0, 0, 0, 1, 1, 2], [0], [0]>} : vector<4x16x16xf32>, vector<4x16x16xf32>, vector<4x16x16xf32> -> vector<4x16x16xf32>
    "tpu.trace_stop"() : () -> ()
    %30 = vector.shape_cast %29 : vector<4x16x16xf32> to vector<4x256xf32>
    %cst_24 = arith.constant dense<0.000000e+00> : vector<4x256xf32>
    %31 = tpu.matmul %23, %30, %cst_24 {dimension_numbers = #tpu.dot_dimension_numbers<[1], [0], [0], [1], [0, 0, 1, 1], [], []>} : vector<4x4xf32>, vector<4x256xf32>, vector<4x256xf32> -> vector<4x256xf32>
    %32 = arith.addf %17, %31 : vector<4x256xf32>
    %c2 = arith.constant 2 : index
    %c0_25 = arith.constant 0 : index
    %c0_26 = arith.constant 0 : index
    %33 = vector.load %arg2[%c2, %c0_25, %c0_26] : memref<3x16x16xf32, #tpu.memory_space<vmem>>, vector<1x16x16xf32>
    %34 = vector.shape_cast %33 : vector<1x16x16xf32> to vector<16x16xf32>
    %c2_27 = arith.constant 2 : index
    %c0_28 = arith.constant 0 : index
    %c0_29 = arith.constant 0 : index
    %35 = vector.load %arg3[%c2_27, %c0_28, %c0_29] : memref<3x16x16xf32, #tpu.memory_space<vmem>>, vector<1x16x16xf32>
    %36 = vector.shape_cast %35 : vector<1x16x16xf32> to vector<16x16xf32>
    %c2_30 = arith.constant 2 : index
    %c0_31 = arith.constant 0 : index
    %c0_32 = arith.constant 0 : index
    %37 = vector.load %arg4[%c2_30, %c0_31, %c0_32] : memref<3x4x4xf32, #tpu.memory_space<vmem>>, vector<1x4x4xf32>
    %38 = vector.shape_cast %37 : vector<1x4x4xf32> to vector<4x4xf32>
    %cst_33 = arith.constant dense<0.000000e+00> : vector<64x16xf32>
    %39 = tpu.matmul %1, %34, %cst_33 {dimension_numbers = #tpu.dot_dimension_numbers<[1], [0], [0], [1], [0, 0, 1, 1], [], []>} : vector<64x16xf32>, vector<16x16xf32>, vector<64x16xf32> -> vector<64x16xf32>
    %40 = vector.shape_cast %39 : vector<64x16xf32> to vector<4x16x16xf32>
    %41 = vector.shape_cast %36 : vector<16x16xf32> to vector<1x16x16xf32>
    %42 = vector.shape_cast %41 : vector<1x16x16xf32> to vector<1x16x16xf32>
    %43 = vector.broadcast %42 : vector<1x16x16xf32> to vector<4x16x16xf32>
    "tpu.trace_start"() <{level = 10 : i32, message = "bij,bjk->bik"}> : () -> ()
    %cst_34 = arith.constant dense<0.000000e+00> : vector<4x16x16xf32>
    %44 = tpu.matmul %43, %40, %cst_34 {dimension_numbers = #tpu.dot_dimension_numbers<[2], [1], [1], [2], [0, 0, 0, 1, 1, 2], [0], [0]>} : vector<4x16x16xf32>, vector<4x16x16xf32>, vector<4x16x16xf32> -> vector<4x16x16xf32>
    "tpu.trace_stop"() : () -> ()
    %45 = vector.shape_cast %44 : vector<4x16x16xf32> to vector<4x256xf32>
    %cst_35 = arith.constant dense<0.000000e+00> : vector<4x256xf32>
    %46 = tpu.matmul %38, %45, %cst_35 {dimension_numbers = #tpu.dot_dimension_numbers<[1], [0], [0], [1], [0, 0, 1, 1], [], []>} : vector<4x4xf32>, vector<4x256xf32>, vector<4x256xf32> -> vector<4x256xf32>
    %47 = arith.addf %32, %46 : vector<4x256xf32>
    %c0_36 = arith.constant 0 : index
    %c0_37 = arith.constant 0 : index
    %c0_38 = arith.constant 0 : index
    %48 = vector.load %arg5[%c0_36, %c0_37, %c0_38] : memref<1x4x256xf32, #tpu.memory_space<vmem>>, vector<1x4x256xf32>
    %49 = vector.shape_cast %48 : vector<1x4x256xf32> to vector<4x256xf32>
    %50 = vector.shape_cast %47 : vector<4x256xf32> to vector<1x4x256xf32>
    tpu.vector_store %arg5[%c0_36, %c0_37, %c0_38], %50 {strides = array<i32>} : memref<1x4x256xf32, #tpu.memory_space<vmem>>, vector<1x4x256xf32>,
    return
  }
  func.func @transform_0(%arg0: i32) -> (i32, i32, i32) {
    %c0_i32 = arith.constant 0 : i32
    %c0_i32_0 = arith.constant 0 : i32
    %c0_i32_1 = arith.constant 0 : i32
    return %arg0, %c0_i32, %c0_i32_0 : i32, i32, i32
  }
  func.func @transform_1(%arg0: i32) -> (i32, i32, i32) {
    %c0_i32 = arith.constant 0 : i32
    %c0_i32_0 = arith.constant 0 : i32
    %c0_i32_1 = arith.constant 0 : i32
    %c0_i32_2 = arith.constant 0 : i32
    return %c0_i32, %c0_i32_0, %c0_i32_1 : i32, i32, i32
  }
  func.func @transform_2(%arg0: i32) -> (i32, i32, i32) {
    %c0_i32 = arith.constant 0 : i32
    %c0_i32_0 = arith.constant 0 : i32
    %c0_i32_1 = arith.constant 0 : i32
    %c0_i32_2 = arith.constant 0 : i32
    return %c0_i32, %c0_i32_0, %c0_i32_1 : i32, i32, i32
  }
  func.func @transform_3(%arg0: i32) -> (i32, i32, i32) {
    %c0_i32 = arith.constant 0 : i32
    %c0_i32_0 = arith.constant 0 : i32
    %c0_i32_1 = arith.constant 0 : i32
    %c0_i32_2 = arith.constant 0 : i32
    return %c0_i32, %c0_i32_0, %c0_i32_1 : i32, i32, i32
  }
  func.func @transform_4(%arg0: i32) -> (i32, i32, i32) {
    %c0_i32 = arith.constant 0 : i32
    %c0_i32_0 = arith.constant 0 : i32
    %c0_i32_1 = arith.constant 0 : i32
    return %arg0, %c0_i32, %c0_i32_0 : i32, i32, i32
  }
}

</mosaic_0001>

<llo_original>
// kernel: tpu_custom_call.1
$region0: #{tpu_custom_call.1}
  #allocation0 [shape = 'u32[]', space=smem, size = 0x4, offset = 0x4, fixed_abs, tag = 'smem constant byte address 0x4 - core index']
  #allocation1 [shape = 'u32[144,128]{1,0:T(1,128)}', space=vmem, size = 0x12000, scoped, tag = 'internal scratch']
  %s0 = inlined_call_operand.vmem [shape: f32[2,64,16], index: 0, kind: input, shape index: {}]
  %s1 = inlined_call_operand.vmem [shape: f32[3,16,16], index: 1, kind: input, shape index: {}]
  %s2 = inlined_call_operand.vmem [shape: f32[3,16,16], index: 2, kind: input, shape index: {}]
  %s3 = inlined_call_operand.vmem [shape: f32[3,4,4], index: 3, kind: input, shape index: {}]
  %s4 = inlined_call_operand.hbm [shape: f32[2,4,256], index: 4, kind: output, shape index: {}]
  %s5 = sld [smem:[#allocation0]]
  $region49: #{tpu_custom_call.1} parent=0
    _
  %s7 = ssub.s32 1, %s5
  %s8 = scalar_select 0, %s7, %s5
  $region1: #{tpu_custom_call.1} parent=0
    #allocation2 [shape = 'u8[8192]{0}', space=vmem, size = 0x2000, scoped, tag = 'output window, operand 0']
    #allocation3 [shape = 's32[2]{0}', space=sflag, size = 0x8, scoped, tag = 'scoped memory for tpu_custom_call.1']
    %9 = vsyncpa [#allocation3], 0
    %s10 = scalar_lea.sflag [#allocation3], 1
    %11 = vsyncpa %s10, 0
    loop: start=0, step=1, limit=4
    $region2: #{tpu_custom_call.1} parent=1 // loop_pre_header
      _
    $region3: #{tpu_custom_call.1} parent=1 // loop_header
      %s13 = sphi 0, %s17
      %p14 = scmp.ge.s32.totalorder %s13, 4
      %s23 = sphi 0, %s25
      %s26 = sphi 0, %s23
      %s27 = sphi 0, %s26
      %s43 = sphi 0, %s27
      %s47 = sphi 0, %s47
      %s49 = sphi 0, %s47
      %s50 = sphi 0, %s49
      %s64 = sphi 0, %s50
      %s68 = sphi 0, %s68
      %s70 = sphi 0, %s68
      %s71 = sphi 0, %s70
      %s85 = sphi 0, %s71
      %s89 = sphi 0, %s89
      %s91 = sphi 0, %s89
      %s92 = sphi 0, %s91
      %s106 = sphi 0, %s92
      %s112 = sphi 0, %s114
      %s115 = sphi 0, %s112
      %s116 = sphi 0, %s115
      %s132 = sphi 0, %s116
    $region4: #{tpu_custom_call.1} parent=1 // loop_header_branch
      %16 = sbr.rel (%p14) target = $region8
    $region5: #{tpu_custom_call.1} parent=1 // loop_body
      %s18 = ssub.s32 %s13, 1
      %s19 = ssub.s32 %s13, 2
      %s20 = sadd.s32 %s13, 1
      %s21 = ssub.s32 %s13, %s20
      %p22 = scmp.eq.s32.totalorder %s21, 0
      %s24 = sadd.s32 %s23, 1
      %s25 = scalar_select %p22, %s23, %s24
      %p28 = pneg %p22
      %p29 = scmp.eq.s32.totalorder %s13, 1
      %p30 = por %p28, %p29
      %p31 = scmp.ne.s32.totalorder %s23, %s26
      %p32 = scmp.eq.s32.totalorder %s13, 0
      %p33 = por %p31, %p32
      %p34 = scmp.ne.s32.totalorder %s23, %s26
      %p35 = scmp.eq.s32.totalorder %s18, 1
      %p36 = por %p34, %p35
      %p37 = scmp.ne.s32.totalorder %s26, %s27
      %p38 = scmp.eq.s32.totalorder %s18, 0
      %p39 = por %p37, %p38
      %p40 = scmp.ne.s32.totalorder %s26, %s27
      %p41 = scmp.eq.s32.totalorder %s19, 1
      %p42 = por %p40, %p41
      %p44 = scmp.ne.s32.totalorder %s27, %s43
      %p45 = scmp.eq.s32.totalorder %s19, 0
      %p46 = por %p44, %p45
      %s48 = sadd.s32 %s47, 1
      %p51 = scmp.eq.s32.totalorder %s13, 1
      %p52 = scmp.ne.s32.totalorder %s47, %s49
      %p53 = scmp.eq.s32.totalorder %s13, 0
      %p54 = por %p52, %p53
      %p55 = scmp.ne.s32.totalorder %s47, %s49
      %p56 = scmp.eq.s32.totalorder %s18, 1
      %p57 = por %p55, %p56
      %p58 = scmp.ne.s32.totalorder %s49, %s50
      %p59 = scmp.eq.s32.totalorder %s18, 0
      %p60 = por %p58, %p59
      %p61 = scmp.ne.s32.totalorder %s49, %s50
      %p62 = scmp.eq.s32.totalorder %s19, 1
      %p63 = por %p61, %p62
      %p65 = scmp.ne.s32.totalorder %s50, %s64
      %p66 = scmp.eq.s32.totalorder %s19, 0
      %p67 = por %p65, %p66
      %s69 = sadd.s32 %s68, 1
      %p72 = scmp.eq.s32.totalorder %s13, 1
      %p73 = scmp.ne.s32.totalorder %s68, %s70
      %p74 = scmp.eq.s32.totalorder %s13, 0
      %p75 = por %p73, %p74
      %p76 = scmp.ne.s32.totalorder %s68, %s70
      %p77 = scmp.eq.s32.totalorder %s18, 1
      %p78 = por %p76, %p77
      %p79 = scmp.ne.s32.totalorder %s70, %s71
      %p80 = scmp.eq.s32.totalorder %s18, 0
      %p81 = por %p79, %p80
      %p82 = scmp.ne.s32.totalorder %s70, %s71
      %p83 = scmp.eq.s32.totalorder %s19, 1
      %p84 = por %p82, %p83
      %p86 = scmp.ne.s32.totalorder %s71, %s85
      %p87 = scmp.eq.s32.totalorder %s19, 0
      %p88 = por %p86, %p87
      %s90 = sadd.s32 %s89, 1
      %p93 = scmp.eq.s32.totalorder %s13, 1
      %p94 = scmp.ne.s32.totalorder %s89, %s91
      %p95 = scmp.eq.s32.totalorder %s13, 0
      %p96 = por %p94, %p95
      %p97 = scmp.ne.s32.totalorder %s89, %s91
      %p98 = scmp.eq.s32.totalorder %s18, 1
      %p99 = por %p97, %p98
      %p100 = scmp.ne.s32.totalorder %s91, %s92
      %p101 = scmp.eq.s32.totalorder %s18, 0
      %p102 = por %p100, %p101
      %p103 = scmp.ne.s32.totalorder %s91, %s92
      %p104 = scmp.eq.s32.totalorder %s19, 1
      %p105 = por %p103, %p104
      %p107 = scmp.ne.s32.totalorder %s92, %s106
      %p108 = scmp.eq.s32.totalorder %s19, 0
      %p109 = por %p107, %p108
      %s110 = ssub.s32 %s13, %s20
      %p111 = scmp.eq.s32.totalorder %s110, 0
      %s113 = sadd.s32 %s112, 1
      %s114 = scalar_select %p111, %s112, %s113
      %p117 = pneg %p111
      %p118 = scmp.eq.s32.totalorder %s13, 1
      %p119 = por %p117, %p118
      %p120 = scmp.ne.s32.totalorder %s112, %s115
      %p121 = scmp.eq.s32.totalorder %s13, 0
      %p122 = por %p120, %p121
      %p123 = scmp.ne.s32.totalorder %s112, %s115
      %p124 = scmp.eq.s32.totalorder %s18, 1
      %p125 = por %p123, %p124
      %p126 = scmp.ne.s32.totalorder %s115, %s116
      %p127 = scmp.eq.s32.totalorder %s18, 0
      %p128 = por %p126, %p127
      %p129 = scmp.ne.s32.totalorder %s115, %s116
      %p130 = scmp.eq.s32.totalorder %s19, 1
      %p131 = por %p129, %p130
      %p133 = scmp.ne.s32.totalorder %s116, %s132
      %p134 = scmp.eq.s32.totalorder %s19, 0
      %p135 = por %p133, %p134
      %p136 = scmp.le.s32.totalorder 1, %s13
      %p137 = scmp.lt.s32.totalorder %s13, 3
      %p138 = pnand %p136, %p137
      %p139 = pneg %p138
      // Predicated region
      $region9: #{tpu_custom_call.1} parent=5 // pred_check
        _
      $region10: #{tpu_custom_call.1} parent=5 // pred_check_branch
        %141 = sbr.rel (%p138) target = $region12
      $region11: #{tpu_custom_call.1} parent=5 // pred_region
        %s142 = ssub.s32 %s13, 1
        // Predicated region
        $region13: #{tpu_custom_call.1} parent=11 // pred_check
          %p143 = pneg %p60
        $region14: #{tpu_custom_call.1} parent=11 // pred_check_branch
          %145 = sbr.rel (%p143) target = $region16
        $region15: #{tpu_custom_call.1} parent=11 // pred_region
          _
        $region16: #{tpu_custom_call.1} parent=11 // pred_fallthru
          _
        // Predicated region
        $region17: #{tpu_custom_call.1} parent=11 // pred_check
          %p146 = pneg %p81
        $region18: #{tpu_custom_call.1} parent=11 // pred_check_branch
          %148 = sbr.rel (%p146) target = $region20
        $region19: #{tpu_custom_call.1} parent=11 // pred_region
          _
        $region20: #{tpu_custom_call.1} parent=11 // pred_fallthru
          _
        // Predicated region
        $region21: #{tpu_custom_call.1} parent=11 // pred_check
          %p149 = pneg %p102
        $region22: #{tpu_custom_call.1} parent=11 // pred_check_branch
          %151 = sbr.rel (%p149) target = $region24
        $region23: #{tpu_custom_call.1} parent=11 // pred_region
          _
        $region24: #{tpu_custom_call.1} parent=11 // pred_fallthru
          _
      $region12: #{tpu_custom_call.1} parent=5 // pred_fallthru
        _
      %p152 = scmp.lt.s32.totalorder %s13, 2
      // Predicated region
      $region25: #{tpu_custom_call.1} parent=5 // pred_check
        %p153 = pneg %p152
      $region26: #{tpu_custom_call.1} parent=5 // pred_check_branch
        %155 = sbr.rel (%p153) target = $region28
      $region27: #{tpu_custom_call.1} parent=5 // pred_region
        // Predicated region
        $region29: #{tpu_custom_call.1} parent=27 // pred_check
          %p156 = pneg %p33
        $region30: #{tpu_custom_call.1} parent=27 // pred_check_branch
          %158 = sbr.rel (%p156) target = $region32
        $region31: #{tpu_custom_call.1} parent=27 // pred_region
          %p159 = scmp.lt.s32.totalorder %s13, 1
          %s160 = scalar_select %p159, %s13, 1
          %s161 = smul.addr %s160, 8
          %s162 = smul.addr %s161, 8
          %s163 = scalar_lea.vmem %s0, %s162
        $region32: #{tpu_custom_call.1} parent=27 // pred_fallthru
          _
      $region28: #{tpu_custom_call.1} parent=5 // pred_fallthru
        _
      %p164 = scmp.le.s32.totalorder 1, %s13
      %p165 = scmp.lt.s32.totalorder %s13, 3
      %p166 = pnand %p164, %p165
      %p167 = pneg %p166
      // Predicated region
      $region33: #{tpu_custom_call.1} parent=5 // pred_check
        _
      $region34: #{tpu_custom_call.1} parent=5 // pred_check_branch
        %169 = sbr.rel (%p166) target = $region36
      $region35: #{tpu_custom_call.1} parent=5 // pred_region
        %s170 = ssub.s32 %s13, 1
        %p171 = scmp.lt.s32.totalorder %s18, 1
        %s172 = scalar_select %p171, %s18, 1
        %s173 = smul.addr %s172, 8
        %s174 = smul.addr %s173, 8
        %s175 = scalar_lea.vmem %s0, %s174
        %p176 = pneg %p39
        %p177 = pneg %p36
        %p178 = pneg %p60
        %p179 = pneg %p57
        %p180 = pneg %p81
        %p181 = pneg %p78
        %p182 = pneg %p102
        %p183 = pneg %p99
        %p184 = pneg %p128
        %p185 = pneg %p125
        %s186 = sand.u32 %s115, 1
        %s187 = scalar_lea.sflag [#allocation3], %s186
        %s188 = sand.u32 %s115, 1
        %s189 = smul.addr %s188, 8
        %s190 = scalar_lea.vmem [#allocation2], %s189
        %p191 = scmp.lt.s32.totalorder %s18, 1
        %s192 = scalar_select %p191, %s18, 1
        %s193 = smul.addr %s192, 8
        %s194 = smul.addr %s193, 8
        %s195 = scalar_lea.vmem %s0, %s194
        %v196 = vld [vmem:[%s195] sm:$0xff]
        %v197 = vld [vmem:[%s195 + $0x8] sm:$0xff]
        %v198 = vld [vmem:[%s195 + $0x10] sm:$0xff]
        %v199 = vld [vmem:[%s195 + $0x18] sm:$0xff]
        %v200 = vld [vmem:[%s195 + $0x20] sm:$0xff]
        %v201 = vld [vmem:[%s195 + $0x28] sm:$0xff]
        %v202 = vld [vmem:[%s195 + $0x30] sm:$0xff]
        %v203 = vld [vmem:[%s195 + $0x38] sm:$0xff]
        %v204 = vld [vmem:[%s1] sm:$0xff]
        %v205 = vld [vmem:[%s1 + $0x8] sm:$0xff]
        %v206 = vld [vmem:[%s2] sm:$0xff]
        %v207 = vld [vmem:[%s2 + $0x8] sm:$0xff]
        %v208 = vld [vmem:[%s3] sm:$0xf]
        %vm209 = vcmask 130048
        %v211 = vsel %vm209, %v196, 0
        %v214 = vsel %vm209, %v197, 0
        %v217 = vsel %vm209, %v198, 0
        %v220 = vsel %vm209, %v199, 0
        %v223 = vsel %vm209, %v200, 0
        %v226 = vsel %vm209, %v201, 0
        %v229 = vsel %vm209, %v202, 0
        %v232 = vsel %vm209, %v203, 0
        %234 = vmatprep.subr.mxu0 0.0
        %235 = vmatpush1.msra.mxu0 0.0
        %236 = vmatprep.subr.mxu0 0.0
        %237 = vmatpush1.msra.mxu0 0.0
        %238 = vmatprep.subr.mxu0 0.0
        %239 = vmatpush1.msra.mxu0 0.0
        %240 = vmatprep.subr.mxu0 0.0
        %241 = vmatpush1.msra.mxu0 0.0
        %242 = vmatprep.subr.mxu0 0.0
        %243 = vmatpush1.msra.mxu0 0.0
        %244 = vmatprep.subr.mxu0 0.0
        %245 = vmatpush1.msra.mxu0 0.0
        %246 = vmatprep.subr.mxu0 0.0
        %247 = vmatpush1.msra.mxu0 0.0
        %248 = vmatprep.subr.mxu0 0.0
        %249 = vmatpush1.msra.mxu0 0.0
        %250 = vmatprep.subr.mxu0 0.0
        %251 = vmatpush1.msra.mxu0 0.0
        %252 = vmatprep.subr.mxu0 0.0
        %253 = vmatpush1.msra.mxu0 0.0
        %254 = vmatprep.subr.mxu0 0.0
        %255 = vmatpush1.msra.mxu0 0.0
        %256 = vmatprep.subr.mxu0 0.0
        %257 = vmatpush1.msra.mxu0 0.0
        %258 = vmatprep.subr.mxu0 0.0
        %259 = vmatpush1.msra.mxu0 0.0
        %260 = vmatprep.subr.mxu0 0.0
        %261 = vmatpush1.msra.mxu0 0.0
        %262 = vmatprep.subr.mxu0 0.0
        %263 = vmatpush1.msra.mxu0 %v205
        %264 = vmatprep.subr.mxu0 0.0
        %265 = vmatpush1.msra.mxu0 %v204
        %266 = vmatprep.subr.mxu0 0.0
        %267 = vmatpush2.msra.mxu0 0.0
        %268 = vmatprep.subr.mxu0 0.0
        %269 = vmatpush2.msra.mxu0 0.0
        %270 = vmatprep.subr.mxu0 0.0
        %271 = vmatpush2.msra.mxu0 0.0
        %272 = vmatprep.subr.mxu0 0.0
        %273 = vmatpush2.msra.mxu0 0.0
        %274 = vmatprep.subr.mxu0 0.0
        %275 = vmatpush2.msra.mxu0 0.0
        %276 = vmatprep.subr.mxu0 0.0
        %277 = vmatpush2.msra.mxu0 0.0
        %278 = vmatprep.subr.mxu0 0.0
        %279 = vmatpush2.msra.mxu0 0.0
        %280 = vmatprep.subr.mxu0 0.0
        %281 = vmatpush2.msra.mxu0 0.0
        %282 = vmatprep.subr.mxu0 0.0
        %283 = vmatpush2.msra.mxu0 0.0
        %284 = vmatprep.subr.mxu0 0.0
        %285 = vmatpush2.msra.mxu0 0.0
        %286 = vmatprep.subr.mxu0 0.0
        %287 = vmatpush2.msra.mxu0 0.0
        %288 = vmatprep.subr.mxu0 0.0
        %289 = vmatpush2.msra.mxu0 0.0
        %290 = vmatprep.subr.mxu0 0.0
        %291 = vmatpush2.msra.mxu0 0.0
        %292 = vmatprep.subr.mxu0 0.0
        %293 = vmatpush2.msra.mxu0 0.0
        %294 = vmatprep.subr.mxu0 0.0
        %295 = vmatpush2.msra.mxu0 0.0
        %296 = vmatprep.subr.mxu0 0.0
        %297 = vmatpush2.msra.mxu0 0.0
        %298 = vmatprep.mubr.f32.mxu0 0.0
        %299 = vmatmul.mubr.f32.gmra.mxu0 %v211
        %v300 = vpop.f32.mrf.mxu0
        %v301 = vadd.f32 0.0, %v300
        %v302 = vpop.f32.mrf.mxu0
        %303 = vmatprep.mubr.f32.mxu0 0.0
        %304 = vmatmul.mubr.f32.gmra.mxu0 %v214
        %v305 = vpop.f32.mrf.mxu0
        %v306 = vadd.f32 0.0, %v305
        %v307 = vpop.f32.mrf.mxu0
        %308 = vmatprep.mubr.f32.mxu0 0.0
        %309 = vmatmul.mubr.f32.gmra.mxu0 %v217
        %v310 = vpop.f32.mrf.mxu0
        %v311 = vadd.f32 0.0, %v310
        %v312 = vpop.f32.mrf.mxu0
        %313 = vmatprep.mubr.f32.mxu0 0.0
        %314 = vmatmul.mubr.f32.gmra.mxu0 %v220
        %v315 = vpop.f32.mrf.mxu0
        %v316 = vadd.f32 0.0, %v315
        %v317 = vpop.f32.mrf.mxu0
        %318 = vmatprep.mubr.f32.mxu0 0.0
        %319 = vmatmul.mubr.f32.gmra.mxu0 %v223
        %v320 = vpop.f32.mrf.mxu0
        %v321 = vadd.f32 0.0, %v320
        %v322 = vpop.f32.mrf.mxu0
        %323 = vmatprep.mubr.f32.mxu0 0.0
        %324 = vmatmul.mubr.f32.gmra.mxu0 %v226
        %v325 = vpop.f32.mrf.mxu0
        %v326 = vadd.f32 0.0, %v325
        %v327 = vpop.f32.mrf.mxu0
        %328 = vmatprep.mubr.f32.mxu0 0.0
        %329 = vmatmul.mubr.f32.gmra.mxu0 %v229
        %v330 = vpop.f32.mrf.mxu0
        %v331 = vadd.f32 0.0, %v330
        %v332 = vpop.f32.mrf.mxu0
        %333 = vmatprep.mubr.f32.mxu0 0.0
        %334 = vmatmul.mubr.f32.gmra.mxu0 %v232
        %v335 = vpop.f32.mrf.mxu0
        %v336 = vadd.f32 0.0, %v335
        %v337 = vpop.f32.mrf.mxu0
        %338 = vdwg.mxu0
        %v340 = vsel %vm209, %v206, 0
        %v343 = vsel %vm209, %v207, 0
        %345 = vmatprep.subr.mxu0 0.0
        %346 = vmatpush1.msra.mxu0 0.0
        %347 = vmatprep.subr.mxu0 0.0
        %348 = vmatpush1.msra.mxu0 0.0
        %349 = vmatprep.subr.mxu0 0.0
        %350 = vmatpush1.msra.mxu0 0.0
        %351 = vmatprep.subr.mxu0 0.0
        %352 = vmatpush1.msra.mxu0 0.0
        %353 = vmatprep.subr.mxu0 0.0
        %354 = vmatpush1.msra.mxu0 0.0
        %355 = vmatprep.subr.mxu0 0.0
        %356 = vmatpush1.msra.mxu0 0.0
        %357 = vmatprep.subr.mxu0 0.0
        %358 = vmatpush1.msra.mxu0 0.0
        %359 = vmatprep.subr.mxu0 0.0
        %360 = vmatpush1.msra.mxu0 0.0
        %361 = vmatprep.subr.mxu0 0.0
        %362 = vmatpush1.msra.mxu0 0.0
        %363 = vmatprep.subr.mxu0 0.0
        %364 = vmatpush1.msra.mxu0 0.0
        %365 = vmatprep.subr.mxu0 0.0
        %366 = vmatpush1.msra.mxu0 0.0
        %367 = vmatprep.subr.mxu0 0.0
        %368 = vmatpush1.msra.mxu0 0.0
        %369 = vmatprep.subr.mxu0 0.0
        %370 = vmatpush1.msra.mxu0 0.0
        %371 = vmatprep.subr.mxu0 0.0
        %372 = vmatpush1.msra.mxu0 0.0
        %373 = vmatprep.subr.mxu0 0.0
        %374 = vmatpush1.msra.mxu0 %v306
        %375 = vmatprep.subr.mxu0 0.0
        %376 = vmatpush1.msra.mxu0 %v301
        %377 = vmatprep.subr.mxu0 0.0
        %378 = vmatpush2.msra.mxu0 0.0
        %379 = vmatprep.subr.mxu0 0.0
        %380 = vmatpush2.msra.mxu0 0.0
        %381 = vmatprep.subr.mxu0 0.0
        %382 = vmatpush2.msra.mxu0 0.0
        %383 = vmatprep.subr.mxu0 0.0
        %384 = vmatpush2.msra.mxu0 0.0
        %385 = vmatprep.subr.mxu0 0.0
        %386 = vmatpush2.msra.mxu0 0.0
        %387 = vmatprep.subr.mxu0 0.0
        %388 = vmatpush2.msra.mxu0 0.0
        %389 = vmatprep.subr.mxu0 0.0
        %390 = vmatpush2.msra.mxu0 0.0
        %391 = vmatprep.subr.mxu0 0.0
        %392 = vmatpush2.msra.mxu0 0.0
        %393 = vmatprep.subr.mxu0 0.0
        %394 = vmatpush2.msra.mxu0 0.0
        %395 = vmatprep.subr.mxu0 0.0
        %396 = vmatpush2.msra.mxu0 0.0
        %397 = vmatprep.subr.mxu0 0.0
        %398 = vmatpush2.msra.mxu0 0.0
        %399 = vmatprep.subr.mxu0 0.0
        %400 = vmatpush2.msra.mxu0 0.0
        %401 = vmatprep.subr.mxu0 0.0
        %402 = vmatpush2.msra.mxu0 0.0
        %403 = vmatprep.subr.mxu0 0.0
        %404 = vmatpush2.msra.mxu0 0.0
        %405 = vmatprep.subr.mxu0 0.0
        %406 = vmatpush2.msra.mxu0 0.0
        %407 = vmatprep.subr.mxu0 0.0
        %408 = vmatpush2.msra.mxu0 0.0
        %409 = vmatprep.mubr.f32.mxu0 0.0
        %410 = vmatmul.mubr.f32.gmra.mxu0 %v340
        %v411 = vpop.f32.mrf.mxu0
        %v412 = vadd.f32 0.0, %v411
        %v413 = vpop.f32.mrf.mxu0
        %414 = vmatprep.mubr.f32.mxu0 0.0
        %415 = vmatmul.mubr.f32.gmra.mxu0 %v343
        %v416 = vpop.f32.mrf.mxu0
        %v417 = vadd.f32 0.0, %v416
        %v418 = vpop.f32.mrf.mxu0
        %419 = vdwg.mxu0
        %420 = vmatprep.subr.mxu0 0.0
        %421 = vmatpush1.msra.mxu0 0.0
        %422 = vmatprep.subr.mxu0 0.0
        %423 = vmatpush1.msra.mxu0 0.0
        %424 = vmatprep.subr.mxu0 0.0
        %425 = vmatpush1.msra.mxu0 0.0
        %426 = vmatprep.subr.mxu0 0.0
        %427 = vmatpush1.msra.mxu0 0.0
        %428 = vmatprep.subr.mxu0 0.0
        %429 = vmatpush1.msra.mxu0 0.0
        %430 = vmatprep.subr.mxu0 0.0
        %431 = vmatpush1.msra.mxu0 0.0
        %432 = vmatprep.subr.mxu0 0.0
        %433 = vmatpush1.msra.mxu0 0.0
        %434 = vmatprep.subr.mxu0 0.0
        %435 = vmatpush1.msra.mxu0 0.0
        %436 = vmatprep.subr.mxu0 0.0
        %437 = vmatpush1.msra.mxu0 0.0
        %438 = vmatprep.subr.mxu0 0.0
        %439 = vmatpush1.msra.mxu0 0.0
        %440 = vmatprep.subr.mxu0 0.0
        %441 = vmatpush1.msra.mxu0 0.0
        %442 = vmatprep.subr.mxu0 0.0
        %443 = vmatpush1.msra.mxu0 0.0
        %444 = vmatprep.subr.mxu0 0.0
        %445 = vmatpush1.msra.mxu0 0.0
        %446 = vmatprep.subr.mxu0 0.0
        %447 = vmatpush1.msra.mxu0 0.0
        %448 = vmatprep.subr.mxu0 0.0
        %449 = vmatpush1.msra.mxu0 %v316
        %450 = vmatprep.subr.mxu0 0.0
        %451 = vmatpush1.msra.mxu0 %v311
        %452 = vmatprep.subr.mxu0 0.0
        %453 = vmatpush2.msra.mxu0 0.0
        %454 = vmatprep.subr.mxu0 0.0
        %455 = vmatpush2.msra.mxu0 0.0
        %456 = vmatprep.subr.mxu0 0.0
        %457 = vmatpush2.msra.mxu0 0.0
        %458 = vmatprep.subr.mxu0 0.0
        %459 = vmatpush2.msra.mxu0 0.0
        %460 = vmatprep.subr.mxu0 0.0
        %461 = vmatpush2.msra.mxu0 0.0
        %462 = vmatprep.subr.mxu0 0.0
        %463 = vmatpush2.msra.mxu0 0.0
        %464 = vmatprep.subr.mxu0 0.0
        %465 = vmatpush2.msra.mxu0 0.0
        %466 = vmatprep.subr.mxu0 0.0
        %467 = vmatpush2.msra.mxu0 0.0
        %468 = vmatprep.subr.mxu0 0.0
        %469 = vmatpush2.msra.mxu0 0.0
        %470 = vmatprep.subr.mxu0 0.0
        %471 = vmatpush2.msra.mxu0 0.0
        %472 = vmatprep.subr.mxu0 0.0
        %473 = vmatpush2.msra.mxu0 0.0
        %474 = vmatprep.subr.mxu0 0.0
        %475 = vmatpush2.msra.mxu0 0.0
        %476 = vmatprep.subr.mxu0 0.0
        %477 = vmatpush2.msra.mxu0 0.0
        %478 = vmatprep.subr.mxu0 0.0
        %479 = vmatpush2.msra.mxu0 0.0
        %480 = vmatprep.subr.mxu0 0.0
        %481 = vmatpush2.msra.mxu0 0.0
        %482 = vmatprep.subr.mxu0 0.0
        %483 = vmatpush2.msra.mxu0 0.0
        %484 = vmatprep.mubr.f32.mxu0 0.0
        %485 = vmatmul.mubr.f32.gmra.mxu0 %v340
        %v486 = vpop.f32.mrf.mxu0
        %v487 = vadd.f32 0.0, %v486
        %v488 = vpop.f32.mrf.mxu0
        %489 = vmatprep.mubr.f32.mxu0 0.0
        %490 = vmatmul.mubr.f32.gmra.mxu0 %v343
        %v491 = vpop.f32.mrf.mxu0
        %v492 = vadd.f32 0.0, %v491
        %v493 = vpop.f32.mrf.mxu0
        %494 = vdwg.mxu0
        %495 = vmatprep.subr.mxu0 0.0
        %496 = vmatpush1.msra.mxu0 0.0
        %497 = vmatprep.subr.mxu0 0.0
        %498 = vmatpush1.msra.mxu0 0.0
        %499 = vmatprep.subr.mxu0 0.0
        %500 = vmatpush1.msra.mxu0 0.0
        %501 = vmatprep.subr.mxu0 0.0
        %502 = vmatpush1.msra.mxu0 0.0
        %503 = vmatprep.subr.mxu0 0.0
        %504 = vmatpush1.msra.mxu0 0.0
        %505 = vmatprep.subr.mxu0 0.0
        %506 = vmatpush1.msra.mxu0 0.0
        %507 = vmatprep.subr.mxu0 0.0
        %508 = vmatpush1.msra.mxu0 0.0
        %509 = vmatprep.subr.mxu0 0.0
        %510 = vmatpush1.msra.mxu0 0.0
        %511 = vmatprep.subr.mxu0 0.0
        %512 = vmatpush1.msra.mxu0 0.0
        %513 = vmatprep.subr.mxu0 0.0
        %514 = vmatpush1.msra.mxu0 0.0
        %515 = vmatprep.subr.mxu0 0.0
        %516 = vmatpush1.msra.mxu0 0.0
        %517 = vmatprep.subr.mxu0 0.0
        %518 = vmatpush1.msra.mxu0 0.0
        %519 = vmatprep.subr.mxu0 0.0
        %520 = vmatpush1.msra.mxu0 0.0
        %521 = vmatprep.subr.mxu0 0.0
        %522 = vmatpush1.msra.mxu0 0.0
        %523 = vmatprep.subr.mxu0 0.0
        %524 = vmatpush1.msra.mxu0 %v326
        %525 = vmatprep.subr.mxu0 0.0
        %526 = vmatpush1.msra.mxu0 %v321
        %527 = vmatprep.subr.mxu0 0.0
        %528 = vmatpush2.msra.mxu0 0.0
        %529 = vmatprep.subr.mxu0 0.0
        %530 = vmatpush2.msra.mxu0 0.0
        %531 = vmatprep.subr.mxu0 0.0
        %532 = vmatpush2.msra.mxu0 0.0
        %533 = vmatprep.subr.mxu0 0.0
        %534 = vmatpush2.msra.mxu0 0.0
        %535 = vmatprep.subr.mxu0 0.0
        %536 = vmatpush2.msra.mxu0 0.0
        %537 = vmatprep.subr.mxu0 0.0
        %538 = vmatpush2.msra.mxu0 0.0
        %539 = vmatprep.subr.mxu0 0.0
        %540 = vmatpush2.msra.mxu0 0.0
        %541 = vmatprep.subr.mxu0 0.0
        %542 = vmatpush2.msra.mxu0 0.0
        %543 = vmatprep.subr.mxu0 0.0
        %544 = vmatpush2.msra.mxu0 0.0
        %545 = vmatprep.subr.mxu0 0.0
        %546 = vmatpush2.msra.mxu0 0.0
        %547 = vmatprep.subr.mxu0 0.0
        %548 = vmatpush2.msra.mxu0 0.0
        %549 = vmatprep.subr.mxu0 0.0
        %550 = vmatpush2.msra.mxu0 0.0
        %551 = vmatprep.subr.mxu0 0.0
        %552 = vmatpush2.msra.mxu0 0.0
        %553 = vmatprep.subr.mxu0 0.0
        %554 = vmatpush2.msra.mxu0 0.0
        %555 = vmatprep.subr.mxu0 0.0
        %556 = vmatpush2.msra.mxu0 0.0
        %557 = vmatprep.subr.mxu0 0.0
        %558 = vmatpush2.msra.mxu0 0.0
        %559 = vmatprep.mubr.f32.mxu0 0.0
        %560 = vmatmul.mubr.f32.gmra.mxu0 %v340
        %v561 = vpop.f32.mrf.mxu0
        %v562 = vadd.f32 0.0, %v561
        %v563 = vpop.f32.mrf.mxu0
        %564 = vmatprep.mubr.f32.mxu0 0.0
        %565 = vmatmul.mubr.f32.gmra.mxu0 %v343
        %v566 = vpop.f32.mrf.mxu0
        %v567 = vadd.f32 0.0, %v566
        %v568 = vpop.f32.mrf.mxu0
        %569 = vdwg.mxu0
        %570 = vmatprep.subr.mxu0 0.0
        %571 = vmatpush1.msra.mxu0 0.0
        %572 = vmatprep.subr.mxu0 0.0
        %573 = vmatpush1.msra.mxu0 0.0
        %574 = vmatprep.subr.mxu0 0.0
        %575 = vmatpush1.msra.mxu0 0.0
        %576 = vmatprep.subr.mxu0 0.0
        %577 = vmatpush1.msra.mxu0 0.0
        %578 = vmatprep.subr.mxu0 0.0
        %579 = vmatpush1.msra.mxu0 0.0
        %580 = vmatprep.subr.mxu0 0.0
        %581 = vmatpush1.msra.mxu0 0.0
        %582 = vmatprep.subr.mxu0 0.0
        %583 = vmatpush1.msra.mxu0 0.0
        %584 = vmatprep.subr.mxu0 0.0
        %585 = vmatpush1.msra.mxu0 0.0
        %586 = vmatprep.subr.mxu0 0.0
        %587 = vmatpush1.msra.mxu0 0.0
        %588 = vmatprep.subr.mxu0 0.0
        %589 = vmatpush1.msra.mxu0 0.0
        %590 = vmatprep.subr.mxu0 0.0
        %591 = vmatpush1.msra.mxu0 0.0
        %592 = vmatprep.subr.mxu0 0.0
        %593 = vmatpush1.msra.mxu0 0.0
        %594 = vmatprep.subr.mxu0 0.0
        %595 = vmatpush1.msra.mxu0 0.0
        %596 = vmatprep.subr.mxu0 0.0
        %597 = vmatpush1.msra.mxu0 0.0
        %598 = vmatprep.subr.mxu0 0.0
        %599 = vmatpush1.msra.mxu0 %v336
        %600 = vmatprep.subr.mxu0 0.0
        %601 = vmatpush1.msra.mxu0 %v331
        %602 = vmatprep.subr.mxu0 0.0
        %603 = vmatpush2.msra.mxu0 0.0
        %604 = vmatprep.subr.mxu0 0.0
        %605 = vmatpush2.msra.mxu0 0.0
        %606 = vmatprep.subr.mxu0 0.0
        %607 = vmatpush2.msra.mxu0 0.0
        %608 = vmatprep.subr.mxu0 0.0
        %609 = vmatpush2.msra.mxu0 0.0
        %610 = vmatprep.subr.mxu0 0.0
        %611 = vmatpush2.msra.mxu0 0.0
        %612 = vmatprep.subr.mxu0 0.0
        %613 = vmatpush2.msra.mxu0 0.0
        %614 = vmatprep.subr.mxu0 0.0
        %615 = vmatpush2.msra.mxu0 0.0
        %616 = vmatprep.subr.mxu0 0.0
        %617 = vmatpush2.msra.mxu0 0.0
        %618 = vmatprep.subr.mxu0 0.0
        %619 = vmatpush2.msra.mxu0 0.0
        %620 = vmatprep.subr.mxu0 0.0
        %621 = vmatpush2.msra.mxu0 0.0
        %622 = vmatprep.subr.mxu0 0.0
        %623 = vmatpush2.msra.mxu0 0.0
        %624 = vmatprep.subr.mxu0 0.0
        %625 = vmatpush2.msra.mxu0 0.0
        %626 = vmatprep.subr.mxu0 0.0
        %627 = vmatpush2.msra.mxu0 0.0
        %628 = vmatprep.subr.mxu0 0.0
        %629 = vmatpush2.msra.mxu0 0.0
        %630 = vmatprep.subr.mxu0 0.0
        %631 = vmatpush2.msra.mxu0 0.0
        %632 = vmatprep.subr.mxu0 0.0
        %633 = vmatpush2.msra.mxu0 0.0
        %634 = vmatprep.mubr.f32.mxu0 0.0
        %635 = vmatmul.mubr.f32.gmra.mxu0 %v340
        %v636 = vpop.f32.mrf.mxu0
        %v637 = vadd.f32 0.0, %v636
        %v638 = vpop.f32.mrf.mxu0
        %639 = vmatprep.mubr.f32.mxu0 0.0
        %640 = vmatmul.mubr.f32.gmra.mxu0 %v343
        %v641 = vpop.f32.mrf.mxu0
        %v642 = vadd.f32 0.0, %v641
        %v643 = vpop.f32.mrf.mxu0
        %644 = vdwg.mxu0
        %v645 = vcombine.low %v412, %v562
        %v646 = vcombine.high %v412, %v562
        %v648 = vunpack.c.l.s4 1983009808
        %v649 = vunpack.c.0.s8 %v648
        %v650 = vlaneseq
        %v651 = vshrl.u32 %v650, 7
        %v652 = vsub.s32 %v649, %v651
        %v653 = vrot.slane %v645, %v652
        %v655 = vunpack.c.l.s4 1983009808
        %v656 = vunpack.c.0.s8 %v655
        %v657 = vlaneseq
        %v658 = vshrl.u32 %v657, 7
        %v659 = vsub.s32 %v656, %v658
        %v660 = vrot.slane %v646, %v659
        %v661 = vcombine.low %v487, %v637
        %v662 = vcombine.high %v487, %v637
        %v664 = vunpack.c.l.s4 1983009808
        %v665 = vunpack.c.0.s8 %v664
        %v666 = vlaneseq
        %v667 = vshrl.u32 %v666, 7
        %v668 = vsub.s32 %v665, %v667
        %v669 = vrot.slane %v661, %v668
        %v671 = vunpack.c.l.s4 1983009808
        %v672 = vunpack.c.0.s8 %v671
        %v673 = vlaneseq
        %v674 = vshrl.u32 %v673, 7
        %v675 = vsub.s32 %v672, %v674
        %v676 = vrot.slane %v662, %v675
        %v677 = vcombine.low %v653, %v669
        %v678 = vcombine.high %v653, %v669
        %v680 = vunpack.c.l.s4 1934713408
        %v681 = vunpack.c.0.s8 %v680
        %v682 = vlaneseq
        %v683 = vshrl.u32 %v682, 7
        %v684 = vsub.s32 %v681, %v683
        %v685 = vrot.slane %v677, %v684
        %v687 = vunpack.c.l.s4 1934713408
        %v688 = vunpack.c.0.s8 %v687
        %v689 = vlaneseq
        %v690 = vshrl.u32 %v689, 7
        %v691 = vsub.s32 %v688, %v690
        %v692 = vrot.slane %v678, %v691
        %v693 = vcombine.low %v660, %v676
        %v694 = vcombine.high %v660, %v676
        %v696 = vunpack.c.l.s4 1934713408
        %v697 = vunpack.c.0.s8 %v696
        %v698 = vlaneseq
        %v699 = vshrl.u32 %v698, 7
        %v700 = vsub.s32 %v697, %v699
        %v701 = vrot.slane %v693, %v700
        %v703 = vunpack.c.l.s4 1934713408
        %v704 = vunpack.c.0.s8 %v703
        %v705 = vlaneseq
        %v706 = vshrl.u32 %v705, 7
        %v707 = vsub.s32 %v704, %v706
        %v708 = vrot.slane %v694, %v707
        %v709 = vcombine.high %v685, 0.0
        %v710 = vcombine.high %v692, 0.0
        %v711 = vcombine.high %v701, 0.0
        %v712 = vcombine.high %v708, 0.0
        %v713 = vcombine.low %v417, %v567
        %v714 = vcombine.high %v417, %v567
        %v716 = vunpack.c.l.s4 1983009808
        %v717 = vunpack.c.0.s8 %v716
        %v718 = vlaneseq
        %v719 = vshrl.u32 %v718, 7
        %v720 = vsub.s32 %v717, %v719
        %v721 = vrot.slane %v713, %v720
        %v723 = vunpack.c.l.s4 1983009808
        %v724 = vunpack.c.0.s8 %v723
        %v725 = vlaneseq
        %v726 = vshrl.u32 %v725, 7
        %v727 = vsub.s32 %v724, %v726
        %v728 = vrot.slane %v714, %v727
        %v729 = vcombine.low %v492, %v642
        %v730 = vcombine.high %v492, %v642
        %v732 = vunpack.c.l.s4 1983009808
        %v733 = vunpack.c.0.s8 %v732
        %v734 = vlaneseq
        %v735 = vshrl.u32 %v734, 7
        %v736 = vsub.s32 %v733, %v735
        %v737 = vrot.slane %v729, %v736
        %v739 = vunpack.c.l.s4 1983009808
        %v740 = vunpack.c.0.s8 %v739
        %v741 = vlaneseq
        %v742 = vshrl.u32 %v741, 7
        %v743 = vsub.s32 %v740, %v742
        %v744 = vrot.slane %v730, %v743
        %v745 = vcombine.low %v721, %v737
        %v746 = vcombine.high %v721, %v737
        %v748 = vunpack.c.l.s4 1934713408
        %v749 = vunpack.c.0.s8 %v748
        %v750 = vlaneseq
        %v751 = vshrl.u32 %v750, 7
        %v752 = vsub.s32 %v749, %v751
        %v753 = vrot.slane %v745, %v752
        %v755 = vunpack.c.l.s4 1934713408
        %v756 = vunpack.c.0.s8 %v755
        %v757 = vlaneseq
        %v758 = vshrl.u32 %v757, 7
        %v759 = vsub.s32 %v756, %v758
        %v760 = vrot.slane %v746, %v759
        %v761 = vcombine.low %v728, %v744
        %v762 = vcombine.high %v728, %v744
        %v764 = vunpack.c.l.s4 1934713408
        %v765 = vunpack.c.0.s8 %v764
        %v766 = vlaneseq
        %v767 = vshrl.u32 %v766, 7
        %v768 = vsub.s32 %v765, %v767
        %v769 = vrot.slane %v761, %v768
        %v771 = vunpack.c.l.s4 1934713408
        %v772 = vunpack.c.0.s8 %v771
        %v773 = vlaneseq
        %v774 = vshrl.u32 %v773, 7
        %v775 = vsub.s32 %v772, %v774
        %v776 = vrot.slane %v762, %v775
        %v777 = vcombine.high %v753, 0.0
        %v778 = vcombine.high %v760, 0.0
        %v779 = vcombine.high %v769, 0.0
        %v780 = vcombine.high %v776, 0.0
        %782 = vrot.lane.b32.xlu0 %v709, 16
        %v783 = vpop.permute.xlu0 %782
        %786 = vrot.lane.b32.xlu0 %v692, 32
        %v787 = vpop.permute.xlu0 %786
        %790 = vrot.lane.b32.xlu0 %v710, 48
        %v791 = vpop.permute.xlu0 %790
        %794 = vrot.lane.b32.xlu0 %v701, 64
        %v795 = vpop.permute.xlu0 %794
        %798 = vrot.lane.b32.xlu0 %v711, 80
        %v799 = vpop.permute.xlu0 %798
        %802 = vrot.lane.b32.xlu0 %v708, 96
        %v803 = vpop.permute.xlu0 %802
        %806 = vrot.lane.b32.xlu0 %v712, 112
        %v807 = vpop.permute.xlu0 %806
        %810 = vrot.lane.b32.xlu0 %v777, 16
        %v811 = vpop.permute.xlu0 %810
        %814 = vrot.lane.b32.xlu0 %v760, 32
        %v815 = vpop.permute.xlu0 %814
        %818 = vrot.lane.b32.xlu0 %v778, 48
        %v819 = vpop.permute.xlu0 %818
        %822 = vrot.lane.b32.xlu0 %v769, 64
        %v823 = vpop.permute.xlu0 %822
        %826 = vrot.lane.b32.xlu0 %v779, 80
        %v827 = vpop.permute.xlu0 %826
        %830 = vrot.lane.b32.xlu0 %v776, 96
        %v831 = vpop.permute.xlu0 %830
        %834 = vrot.lane.b32.xlu0 %v780, 112
        %v835 = vpop.permute.xlu0 %834
        %v837 = vsel %vm209, %v685, %v783
        %vm838 = vcmask 261120
        %v839 = vsel %vm838, %v837, %v787
        %vm840 = vcmask 392192
        %v841 = vsel %vm840, %v839, %v791
        %vm842 = vcmask 523264
        %v843 = vsel %vm842, %v841, %v795
        %vm844 = vcmask 654336
        %v845 = vsel %vm844, %v843, %v799
        %vm846 = vcmask 785408
        %v847 = vsel %vm846, %v845, %v803
        %vm848 = vcmask 916480
        %v849 = vsel %vm848, %v847, %v807
        %v850 = vsel %vm209, %v753, %v811
        %v851 = vsel %vm838, %v850, %v815
        %v852 = vsel %vm840, %v851, %v819
        %v853 = vsel %vm842, %v852, %v823
        %v854 = vsel %vm844, %v853, %v827
        %v855 = vsel %vm846, %v854, %v831
        %v856 = vsel %vm848, %v855, %v835
        %s857 = scalar_lea.vmem %s1, 16
        %v858 = vld [vmem:[%s857] sm:$0xff]
        %v859 = vld [vmem:[%s857 + $0x8] sm:$0xff]
        %s860 = scalar_lea.vmem %s2, 16
        %v861 = vld [vmem:[%s860] sm:$0xff]
        %v862 = vld [vmem:[%s860 + $0x8] sm:$0xff]
        %s863 = scalar_lea.vmem %s3, 4
        %v864 = vld [vmem:[%s863] sm:$0xf]
        %865 = vmatprep.subr.mxu0 0.0
        %866 = vmatpush1.msra.mxu0 0.0
        %867 = vmatprep.subr.mxu0 0.0
        %868 = vmatpush1.msra.mxu0 0.0
        %869 = vmatprep.subr.mxu0 0.0
        %870 = vmatpush1.msra.mxu0 0.0
        %871 = vmatprep.subr.mxu0 0.0
        %872 = vmatpush1.msra.mxu0 0.0
        %873 = vmatprep.subr.mxu0 0.0
        %874 = vmatpush1.msra.mxu0 0.0
        %875 = vmatprep.subr.mxu0 0.0
        %876 = vmatpush1.msra.mxu0 0.0
        %877 = vmatprep.subr.mxu0 0.0
        %878 = vmatpush1.msra.mxu0 0.0
        %879 = vmatprep.subr.mxu0 0.0
        %880 = vmatpush1.msra.mxu0 0.0
        %881 = vmatprep.subr.mxu0 0.0
        %882 = vmatpush1.msra.mxu0 0.0
        %883 = vmatprep.subr.mxu0 0.0
        %884 = vmatpush1.msra.mxu0 0.0
        %885 = vmatprep.subr.mxu0 0.0
        %886 = vmatpush1.msra.mxu0 0.0
        %887 = vmatprep.subr.mxu0 0.0
        %888 = vmatpush1.msra.mxu0 0.0
        %889 = vmatprep.subr.mxu0 0.0
        %890 = vmatpush1.msra.mxu0 0.0
        %891 = vmatprep.subr.mxu0 0.0
        %892 = vmatpush1.msra.mxu0 0.0
        %893 = vmatprep.subr.mxu0 0.0
        %894 = vmatpush1.msra.mxu0 %v859
        %895 = vmatprep.subr.mxu0 0.0
        %896 = vmatpush1.msra.mxu0 %v858
        %897 = vmatprep.subr.mxu0 0.0
        %898 = vmatpush2.msra.mxu0 0.0
        %899 = vmatprep.subr.mxu0 0.0
        %900 = vmatpush2.msra.mxu0 0.0
        %901 = vmatprep.subr.mxu0 0.0
        %902 = vmatpush2.msra.mxu0 0.0
        %903 = vmatprep.subr.mxu0 0.0
        %904 = vmatpush2.msra.mxu0 0.0
        %905 = vmatprep.subr.mxu0 0.0
        %906 = vmatpush2.msra.mxu0 0.0
        %907 = vmatprep.subr.mxu0 0.0
        %908 = vmatpush2.msra.mxu0 0.0
        %909 = vmatprep.subr.mxu0 0.0
        %910 = vmatpush2.msra.mxu0 0.0
        %911 = vmatprep.subr.mxu0 0.0
        %912 = vmatpush2.msra.mxu0 0.0
        %913 = vmatprep.subr.mxu0 0.0
        %914 = vmatpush2.msra.mxu0 0.0
        %915 = vmatprep.subr.mxu0 0.0
        %916 = vmatpush2.msra.mxu0 0.0
        %917 = vmatprep.subr.mxu0 0.0
        %918 = vmatpush2.msra.mxu0 0.0
        %919 = vmatprep.subr.mxu0 0.0
        %920 = vmatpush2.msra.mxu0 0.0
        %921 = vmatprep.subr.mxu0 0.0
        %922 = vmatpush2.msra.mxu0 0.0
        %923 = vmatprep.subr.mxu0 0.0
        %924 = vmatpush2.msra.mxu0 0.0
        %925 = vmatprep.subr.mxu0 0.0
        %926 = vmatpush2.msra.mxu0 0.0
        %927 = vmatprep.subr.mxu0 0.0
        %928 = vmatpush2.msra.mxu0 0.0
        %929 = vmatprep.mubr.f32.mxu0 0.0
        %930 = vmatmul.mubr.f32.gmra.mxu0 %v211
        %v931 = vpop.f32.mrf.mxu0
        %v932 = vadd.f32 0.0, %v931
        %v933 = vpop.f32.mrf.mxu0
        %934 = vmatprep.mubr.f32.mxu0 0.0
        %935 = vmatmul.mubr.f32.gmra.mxu0 %v214
        %v936 = vpop.f32.mrf.mxu0
        %v937 = vadd.f32 0.0, %v936
        %v938 = vpop.f32.mrf.mxu0
        %939 = vmatprep.mubr.f32.mxu0 0.0
        %940 = vmatmul.mubr.f32.gmra.mxu0 %v217
        %v941 = vpop.f32.mrf.mxu0
        %v942 = vadd.f32 0.0, %v941
        %v943 = vpop.f32.mrf.mxu0
        %944 = vmatprep.mubr.f32.mxu0 0.0
        %945 = vmatmul.mubr.f32.gmra.mxu0 %v220
        %v946 = vpop.f32.mrf.mxu0
        %v947 = vadd.f32 0.0, %v946
        %v948 = vpop.f32.mrf.mxu0
        %949 = vmatprep.mubr.f32.mxu0 0.0
        %950 = vmatmul.mubr.f32.gmra.mxu0 %v223
        %v951 = vpop.f32.mrf.mxu0
        %v952 = vadd.f32 0.0, %v951
        %v953 = vpop.f32.mrf.mxu0
        %954 = vmatprep.mubr.f32.mxu0 0.0
        %955 = vmatmul.mubr.f32.gmra.mxu0 %v226
        %v956 = vpop.f32.mrf.mxu0
        %v957 = vadd.f32 0.0, %v956
        %v958 = vpop.f32.mrf.mxu0
        %959 = vmatprep.mubr.f32.mxu0 0.0
        %960 = vmatmul.mubr.f32.gmra.mxu0 %v229
        %v961 = vpop.f32.mrf.mxu0
        %v962 = vadd.f32 0.0, %v961
        %v963 = vpop.f32.mrf.mxu0
        %964 = vmatprep.mubr.f32.mxu0 0.0
        %965 = vmatmul.mubr.f32.gmra.mxu0 %v232
        %v966 = vpop.f32.mrf.mxu0
        %v967 = vadd.f32 0.0, %v966
        %v968 = vpop.f32.mrf.mxu0
        %969 = vdwg.mxu0
        %v971 = vsel %vm209, %v861, 0
        %v974 = vsel %vm209, %v862, 0
        %976 = vmatprep.subr.mxu0 0.0
        %977 = vmatpush1.msra.mxu0 0.0
        %978 = vmatprep.subr.mxu0 0.0
        %979 = vmatpush1.msra.mxu0 0.0
        %980 = vmatprep.subr.mxu0 0.0
        %981 = vmatpush1.msra.mxu0 0.0
        %982 = vmatprep.subr.mxu0 0.0
        %983 = vmatpush1.msra.mxu0 0.0
        %984 = vmatprep.subr.mxu0 0.0
        %985 = vmatpush1.msra.mxu0 0.0
        %986 = vmatprep.subr.mxu0 0.0
        %987 = vmatpush1.msra.mxu0 0.0
        %988 = vmatprep.subr.mxu0 0.0
        %989 = vmatpush1.msra.mxu0 0.0
        %990 = vmatprep.subr.mxu0 0.0
        %991 = vmatpush1.msra.mxu0 0.0
        %992 = vmatprep.subr.mxu0 0.0
        %993 = vmatpush1.msra.mxu0 0.0
        %994 = vmatprep.subr.mxu0 0.0
        %995 = vmatpush1.msra.mxu0 0.0
        %996 = vmatprep.subr.mxu0 0.0
        %997 = vmatpush1.msra.mxu0 0.0
        %998 = vmatprep.subr.mxu0 0.0
        %999 = vmatpush1.msra.mxu0 0.0
        %1000 = vmatprep.subr.mxu0 0.0
        %1001 = vmatpush1.msra.mxu0 0.0
        %1002 = vmatprep.subr.mxu0 0.0
        %1003 = vmatpush1.msra.mxu0 0.0
        %1004 = vmatprep.subr.mxu0 0.0
        %1005 = vmatpush1.msra.mxu0 %v937
        %1006 = vmatprep.subr.mxu0 0.0
        %1007 = vmatpush1.msra.mxu0 %v932
        %1008 = vmatprep.subr.mxu0 0.0
        %1009 = vmatpush2.msra.mxu0 0.0
        %1010 = vmatprep.subr.mxu0 0.0
        %1011 = vmatpush2.msra.mxu0 0.0
        %1012 = vmatprep.subr.mxu0 0.0
        %1013 = vmatpush2.msra.mxu0 0.0
        %1014 = vmatprep.subr.mxu0 0.0
        %1015 = vmatpush2.msra.mxu0 0.0
        %1016 = vmatprep.subr.mxu0 0.0
        %1017 = vmatpush2.msra.mxu0 0.0
        %1018 = vmatprep.subr.mxu0 0.0
        %1019 = vmatpush2.msra.mxu0 0.0
        %1020 = vmatprep.subr.mxu0 0.0
        %1021 = vmatpush2.msra.mxu0 0.0
        %1022 = vmatprep.subr.mxu0 0.0
        %1023 = vmatpush2.msra.mxu0 0.0
        %1024 = vmatprep.subr.mxu0 0.0
        %1025 = vmatpush2.msra.mxu0 0.0
        %1026 = vmatprep.subr.mxu0 0.0
        %1027 = vmatpush2.msra.mxu0 0.0
        %1028 = vmatprep.subr.mxu0 0.0
        %1029 = vmatpush2.msra.mxu0 0.0
        %1030 = vmatprep.subr.mxu0 0.0
        %1031 = vmatpush2.msra.mxu0 0.0
        %1032 = vmatprep.subr.mxu0 0.0
        %1033 = vmatpush2.msra.mxu0 0.0
        %1034 = vmatprep.subr.mxu0 0.0
        %1035 = vmatpush2.msra.mxu0 0.0
        %1036 = vmatprep.subr.mxu0 0.0
        %1037 = vmatpush2.msra.mxu0 0.0
        %1038 = vmatprep.subr.mxu0 0.0
        %1039 = vmatpush2.msra.mxu0 0.0
        %1040 = vmatprep.mubr.f32.mxu0 0.0
        %1041 = vmatmul.mubr.f32.gmra.mxu0 %v971
        %v1042 = vpop.f32.mrf.mxu0
        %v1043 = vadd.f32 0.0, %v1042
        %v1044 = vpop.f32.mrf.mxu0
        %1045 = vmatprep.mubr.f32.mxu0 0.0
        %1046 = vmatmul.mubr.f32.gmra.mxu0 %v974
        %v1047 = vpop.f32.mrf.mxu0
        %v1048 = vadd.f32 0.0, %v1047
        %v1049 = vpop.f32.mrf.mxu0
        %1050 = vdwg.mxu0
        %1051 = vmatprep.subr.mxu0 0.0
        %1052 = vmatpush1.msra.mxu0 0.0
        %1053 = vmatprep.subr.mxu0 0.0
        %1054 = vmatpush1.msra.mxu0 0.0
        %1055 = vmatprep.subr.mxu0 0.0
        %1056 = vmatpush1.msra.mxu0 0.0
        %1057 = vmatprep.subr.mxu0 0.0
        %1058 = vmatpush1.msra.mxu0 0.0
        %1059 = vmatprep.subr.mxu0 0.0
        %1060 = vmatpush1.msra.mxu0 0.0
        %1061 = vmatprep.subr.mxu0 0.0
        %1062 = vmatpush1.msra.mxu0 0.0
        %1063 = vmatprep.subr.mxu0 0.0
        %1064 = vmatpush1.msra.mxu0 0.0
        %1065 = vmatprep.subr.mxu0 0.0
        %1066 = vmatpush1.msra.mxu0 0.0
        %1067 = vmatprep.subr.mxu0 0.0
        %1068 = vmatpush1.msra.mxu0 0.0
        %1069 = vmatprep.subr.mxu0 0.0
        %1070 = vmatpush1.msra.mxu0 0.0
        %1071 = vmatprep.subr.mxu0 0.0
        %1072 = vmatpush1.msra.mxu0 0.0
        %1073 = vmatprep.subr.mxu0 0.0
        %1074 = vmatpush1.msra.mxu0 0.0
        %1075 = vmatprep.subr.mxu0 0.0
        %1076 = vmatpush1.msra.mxu0 0.0
        %1077 = vmatprep.subr.mxu0 0.0
        %1078 = vmatpush1.msra.mxu0 0.0
        %1079 = vmatprep.subr.mxu0 0.0
        %1080 = vmatpush1.msra.mxu0 %v947
        %1081 = vmatprep.subr.mxu0 0.0
        %1082 = vmatpush1.msra.mxu0 %v942
        %1083 = vmatprep.subr.mxu0 0.0
        %1084 = vmatpush2.msra.mxu0 0.0
        %1085 = vmatprep.subr.mxu0 0.0
        %1086 = vmatpush2.msra.mxu0 0.0
        %1087 = vmatprep.subr.mxu0 0.0
        %1088 = vmatpush2.msra.mxu0 0.0
        %1089 = vmatprep.subr.mxu0 0.0
        %1090 = vmatpush2.msra.mxu0 0.0
        %1091 = vmatprep.subr.mxu0 0.0
        %1092 = vmatpush2.msra.mxu0 0.0
        %1093 = vmatprep.subr.mxu0 0.0
        %1094 = vmatpush2.msra.mxu0 0.0
        %1095 = vmatprep.subr.mxu0 0.0
        %1096 = vmatpush2.msra.mxu0 0.0
        %1097 = vmatprep.subr.mxu0 0.0
        %1098 = vmatpush2.msra.mxu0 0.0
        %1099 = vmatprep.subr.mxu0 0.0
        %1100 = vmatpush2.msra.mxu0 0.0
        %1101 = vmatprep.subr.mxu0 0.0
        %1102 = vmatpush2.msra.mxu0 0.0
        %1103 = vmatprep.subr.mxu0 0.0
        %1104 = vmatpush2.msra.mxu0 0.0
        %1105 = vmatprep.subr.mxu0 0.0
        %1106 = vmatpush2.msra.mxu0 0.0
        %1107 = vmatprep.subr.mxu0 0.0
        %1108 = vmatpush2.msra.mxu0 0.0
        %1109 = vmatprep.subr.mxu0 0.0
        %1110 = vmatpush2.msra.mxu0 0.0
        %1111 = vmatprep.subr.mxu0 0.0
        %1112 = vmatpush2.msra.mxu0 0.0
        %1113 = vmatprep.subr.mxu0 0.0
        %1114 = vmatpush2.msra.mxu0 0.0
        %1115 = vmatprep.mubr.f32.mxu0 0.0
        %1116 = vmatmul.mubr.f32.gmra.mxu0 %v971
        %v1117 = vpop.f32.mrf.mxu0
        %v1118 = vadd.f32 0.0, %v1117
        %v1119 = vpop.f32.mrf.mxu0
        %1120 = vmatprep.mubr.f32.mxu0 0.0
        %1121 = vmatmul.mubr.f32.gmra.mxu0 %v974
        %v1122 = vpop.f32.mrf.mxu0
        %v1123 = vadd.f32 0.0, %v1122
        %v1124 = vpop.f32.mrf.mxu0
        %1125 = vdwg.mxu0
        %1126 = vmatprep.subr.mxu0 0.0
        %1127 = vmatpush1.msra.mxu0 0.0
        %1128 = vmatprep.subr.mxu0 0.0
        %1129 = vmatpush1.msra.mxu0 0.0
        %1130 = vmatprep.subr.mxu0 0.0
        %1131 = vmatpush1.msra.mxu0 0.0
        %1132 = vmatprep.subr.mxu0 0.0
        %1133 = vmatpush1.msra.mxu0 0.0
        %1134 = vmatprep.subr.mxu0 0.0
        %1135 = vmatpush1.msra.mxu0 0.0
        %1136 = vmatprep.subr.mxu0 0.0
        %1137 = vmatpush1.msra.mxu0 0.0
        %1138 = vmatprep.subr.mxu0 0.0
        %1139 = vmatpush1.msra.mxu0 0.0
        %1140 = vmatprep.subr.mxu0 0.0
        %1141 = vmatpush1.msra.mxu0 0.0
        %1142 = vmatprep.subr.mxu0 0.0
        %1143 = vmatpush1.msra.mxu0 0.0
        %1144 = vmatprep.subr.mxu0 0.0
        %1145 = vmatpush1.msra.mxu0 0.0
        %1146 = vmatprep.subr.mxu0 0.0
        %1147 = vmatpush1.msra.mxu0 0.0
        %1148 = vmatprep.subr.mxu0 0.0
        %1149 = vmatpush1.msra.mxu0 0.0
        %1150 = vmatprep.subr.mxu0 0.0
        %1151 = vmatpush1.msra.mxu0 0.0
        %1152 = vmatprep.subr.mxu0 0.0
        %1153 = vmatpush1.msra.mxu0 0.0
        %1154 = vmatprep.subr.mxu0 0.0
        %1155 = vmatpush1.msra.mxu0 %v957
        %1156 = vmatprep.subr.mxu0 0.0
        %1157 = vmatpush1.msra.mxu0 %v952
        %1158 = vmatprep.subr.mxu0 0.0
        %1159 = vmatpush2.msra.mxu0 0.0
        %1160 = vmatprep.subr.mxu0 0.0
        %1161 = vmatpush2.msra.mxu0 0.0
        %1162 = vmatprep.subr.mxu0 0.0
        %1163 = vmatpush2.msra.mxu0 0.0
        %1164 = vmatprep.subr.mxu0 0.0
        %1165 = vmatpush2.msra.mxu0 0.0
        %1166 = vmatprep.subr.mxu0 0.0
        %1167 = vmatpush2.msra.mxu0 0.0
        %1168 = vmatprep.subr.mxu0 0.0
        %1169 = vmatpush2.msra.mxu0 0.0
        %1170 = vmatprep.subr.mxu0 0.0
        %1171 = vmatpush2.msra.mxu0 0.0
        %1172 = vmatprep.subr.mxu0 0.0
        %1173 = vmatpush2.msra.mxu0 0.0
        %1174 = vmatprep.subr.mxu0 0.0
        %1175 = vmatpush2.msra.mxu0 0.0
        %1176 = vmatprep.subr.mxu0 0.0
        %1177 = vmatpush2.msra.mxu0 0.0
        %1178 = vmatprep.subr.mxu0 0.0
        %1179 = vmatpush2.msra.mxu0 0.0
        %1180 = vmatprep.subr.mxu0 0.0
        %1181 = vmatpush2.msra.mxu0 0.0
        %1182 = vmatprep.subr.mxu0 0.0
        %1183 = vmatpush2.msra.mxu0 0.0
        %1184 = vmatprep.subr.mxu0 0.0
        %1185 = vmatpush2.msra.mxu0 0.0
        %1186 = vmatprep.subr.mxu0 0.0
        %1187 = vmatpush2.msra.mxu0 0.0
        %1188 = vmatprep.subr.mxu0 0.0
        %1189 = vmatpush2.msra.mxu0 0.0
        %1190 = vmatprep.mubr.f32.mxu0 0.0
        %1191 = vmatmul.mubr.f32.gmra.mxu0 %v971
        %v1192 = vpop.f32.mrf.mxu0
        %v1193 = vadd.f32 0.0, %v1192
        %v1194 = vpop.f32.mrf.mxu0
        %1195 = vmatprep.mubr.f32.mxu0 0.0
        %1196 = vmatmul.mubr.f32.gmra.mxu0 %v974
        %v1197 = vpop.f32.mrf.mxu0
        %v1198 = vadd.f32 0.0, %v1197
        %v1199 = vpop.f32.mrf.mxu0
        %1200 = vdwg.mxu0
        %1201 = vmatprep.subr.mxu0 0.0
        %1202 = vmatpush1.msra.mxu0 0.0
        %1203 = vmatprep.subr.mxu0 0.0
        %1204 = vmatpush1.msra.mxu0 0.0
        %1205 = vmatprep.subr.mxu0 0.0
        %1206 = vmatpush1.msra.mxu0 0.0
        %1207 = vmatprep.subr.mxu0 0.0
        %1208 = vmatpush1.msra.mxu0 0.0
        %1209 = vmatprep.subr.mxu0 0.0
        %1210 = vmatpush1.msra.mxu0 0.0
        %1211 = vmatprep.subr.mxu0 0.0
        %1212 = vmatpush1.msra.mxu0 0.0
        %1213 = vmatprep.subr.mxu0 0.0
        %1214 = vmatpush1.msra.mxu0 0.0
        %1215 = vmatprep.subr.mxu0 0.0
        %1216 = vmatpush1.msra.mxu0 0.0
        %1217 = vmatprep.subr.mxu0 0.0
        %1218 = vmatpush1.msra.mxu0 0.0
        %1219 = vmatprep.subr.mxu0 0.0
        %1220 = vmatpush1.msra.mxu0 0.0
        %1221 = vmatprep.subr.mxu0 0.0
        %1222 = vmatpush1.msra.mxu0 0.0
        %1223 = vmatprep.subr.mxu0 0.0
        %1224 = vmatpush1.msra.mxu0 0.0
        %1225 = vmatprep.subr.mxu0 0.0
        %1226 = vmatpush1.msra.mxu0 0.0
        %1227 = vmatprep.subr.mxu0 0.0
        %1228 = vmatpush1.msra.mxu0 0.0
        %1229 = vmatprep.subr.mxu0 0.0
        %1230 = vmatpush1.msra.mxu0 %v967
        %1231 = vmatprep.subr.mxu0 0.0
        %1232 = vmatpush1.msra.mxu0 %v962
        %1233 = vmatprep.subr.mxu0 0.0
        %1234 = vmatpush2.msra.mxu0 0.0
        %1235 = vmatprep.subr.mxu0 0.0
        %1236 = vmatpush2.msra.mxu0 0.0
        %1237 = vmatprep.subr.mxu0 0.0
        %1238 = vmatpush2.msra.mxu0 0.0
        %1239 = vmatprep.subr.mxu0 0.0
        %1240 = vmatpush2.msra.mxu0 0.0
        %1241 = vmatprep.subr.mxu0 0.0
        %1242 = vmatpush2.msra.mxu0 0.0
        %1243 = vmatprep.subr.mxu0 0.0
        %1244 = vmatpush2.msra.mxu0 0.0
        %1245 = vmatprep.subr.mxu0 0.0
        %1246 = vmatpush2.msra.mxu0 0.0
        %1247 = vmatprep.subr.mxu0 0.0
        %1248 = vmatpush2.msra.mxu0 0.0
        %1249 = vmatprep.subr.mxu0 0.0
        %1250 = vmatpush2.msra.mxu0 0.0
        %1251 = vmatprep.subr.mxu0 0.0
        %1252 = vmatpush2.msra.mxu0 0.0
        %1253 = vmatprep.subr.mxu0 0.0
        %1254 = vmatpush2.msra.mxu0 0.0
        %1255 = vmatprep.subr.mxu0 0.0
        %1256 = vmatpush2.msra.mxu0 0.0
        %1257 = vmatprep.subr.mxu0 0.0
        %1258 = vmatpush2.msra.mxu0 0.0
        %1259 = vmatprep.subr.mxu0 0.0
        %1260 = vmatpush2.msra.mxu0 0.0
        %1261 = vmatprep.subr.mxu0 0.0
        %1262 = vmatpush2.msra.mxu0 0.0
        %1263 = vmatprep.subr.mxu0 0.0
        %1264 = vmatpush2.msra.mxu0 0.0
        %1265 = vmatprep.mubr.f32.mxu0 0.0
        %1266 = vmatmul.mubr.f32.gmra.mxu0 %v971
        %v1267 = vpop.f32.mrf.mxu0
        %v1268 = vadd.f32 0.0, %v1267
        %v1269 = vpop.f32.mrf.mxu0
        %1270 = vmatprep.mubr.f32.mxu0 0.0
        %1271 = vmatmul.mubr.f32.gmra.mxu0 %v974
        %v1272 = vpop.f32.mrf.mxu0
        %v1273 = vadd.f32 0.0, %v1272
        %v1274 = vpop.f32.mrf.mxu0
        %1275 = vdwg.mxu0
        %v1276 = vcombine.low %v1043, %v1193
        %v1277 = vcombine.high %v1043, %v1193
        %v1279 = vunpack.c.l.s4 1983009808
        %v1280 = vunpack.c.0.s8 %v1279
        %v1281 = vlaneseq
        %v1282 = vshrl.u32 %v1281, 7
        %v1283 = vsub.s32 %v1280, %v1282
        %v1284 = vrot.slane %v1276, %v1283
        %v1286 = vunpack.c.l.s4 1983009808
        %v1287 = vunpack.c.0.s8 %v1286
        %v1288 = vlaneseq
        %v1289 = vshrl.u32 %v1288, 7
        %v1290 = vsub.s32 %v1287, %v1289
        %v1291 = vrot.slane %v1277, %v1290
        %v1292 = vcombine.low %v1118, %v1268
        %v1293 = vcombine.high %v1118, %v1268
        %v1295 = vunpack.c.l.s4 1983009808
        %v1296 = vunpack.c.0.s8 %v1295
        %v1297 = vlaneseq
        %v1298 = vshrl.u32 %v1297, 7
        %v1299 = vsub.s32 %v1296, %v1298
        %v1300 = vrot.slane %v1292, %v1299
        %v1302 = vunpack.c.l.s4 1983009808
        %v1303 = vunpack.c.0.s8 %v1302
        %v1304 = vlaneseq
        %v1305 = vshrl.u32 %v1304, 7
        %v1306 = vsub.s32 %v1303, %v1305
        %v1307 = vrot.slane %v1293, %v1306
        %v1308 = vcombine.low %v1284, %v1300
        %v1309 = vcombine.high %v1284, %v1300
        %v1311 = vunpack.c.l.s4 1934713408
        %v1312 = vunpack.c.0.s8 %v1311
        %v1313 = vlaneseq
        %v1314 = vshrl.u32 %v1313, 7
        %v1315 = vsub.s32 %v1312, %v1314
        %v1316 = vrot.slane %v1308, %v1315
        %v1318 = vunpack.c.l.s4 1934713408
        %v1319 = vunpack.c.0.s8 %v1318
        %v1320 = vlaneseq
        %v1321 = vshrl.u32 %v1320, 7
        %v1322 = vsub.s32 %v1319, %v1321
        %v1323 = vrot.slane %v1309, %v1322
        %v1324 = vcombine.low %v1291, %v1307
        %v1325 = vcombine.high %v1291, %v1307
        %v1327 = vunpack.c.l.s4 1934713408
        %v1328 = vunpack.c.0.s8 %v1327
        %v1329 = vlaneseq
        %v1330 = vshrl.u32 %v1329, 7
        %v1331 = vsub.s32 %v1328, %v1330
        %v1332 = vrot.slane %v1324, %v1331
        %v1334 = vunpack.c.l.s4 1934713408
        %v1335 = vunpack.c.0.s8 %v1334
        %v1336 = vlaneseq
        %v1337 = vshrl.u32 %v1336, 7
        %v1338 = vsub.s32 %v1335, %v1337
        %v1339 = vrot.slane %v1325, %v1338
        %v1340 = vcombine.high %v1316, 0.0
        %v1341 = vcombine.high %v1323, 0.0
        %v1342 = vcombine.high %v1332, 0.0
        %v1343 = vcombine.high %v1339, 0.0
        %v1344 = vcombine.low %v1048, %v1198
        %v1345 = vcombine.high %v1048, %v1198
        %v1347 = vunpack.c.l.s4 1983009808
        %v1348 = vunpack.c.0.s8 %v1347
        %v1349 = vlaneseq
        %v1350 = vshrl.u32 %v1349, 7
        %v1351 = vsub.s32 %v1348, %v1350
        %v1352 = vrot.slane %v1344, %v1351
        %v1354 = vunpack.c.l.s4 1983009808
        %v1355 = vunpack.c.0.s8 %v1354
        %v1356 = vlaneseq
        %v1357 = vshrl.u32 %v1356, 7
        %v1358 = vsub.s32 %v1355, %v1357
        %v1359 = vrot.slane %v1345, %v1358
        %v1360 = vcombine.low %v1123, %v1273
        %v1361 = vcombine.high %v1123, %v1273
        %v1363 = vunpack.c.l.s4 1983009808
        %v1364 = vunpack.c.0.s8 %v1363
        %v1365 = vlaneseq
        %v1366 = vshrl.u32 %v1365, 7
        %v1367 = vsub.s32 %v1364, %v1366
        %v1368 = vrot.slane %v1360, %v1367
        %v1370 = vunpack.c.l.s4 1983009808
        %v1371 = vunpack.c.0.s8 %v1370
        %v1372 = vlaneseq
        %v1373 = vshrl.u32 %v1372, 7
        %v1374 = vsub.s32 %v1371, %v1373
        %v1375 = vrot.slane %v1361, %v1374
        %v1376 = vcombine.low %v1352, %v1368
        %v1377 = vcombine.high %v1352, %v1368
        %v1379 = vunpack.c.l.s4 1934713408
        %v1380 = vunpack.c.0.s8 %v1379
        %v1381 = vlaneseq
        %v1382 = vshrl.u32 %v1381, 7
        %v1383 = vsub.s32 %v1380, %v1382
        %v1384 = vrot.slane %v1376, %v1383
        %v1386 = vunpack.c.l.s4 1934713408
        %v1387 = vunpack.c.0.s8 %v1386
        %v1388 = vlaneseq
        %v1389 = vshrl.u32 %v1388, 7
        %v1390 = vsub.s32 %v1387, %v1389
        %v1391 = vrot.slane %v1377, %v1390
        %v1392 = vcombine.low %v1359, %v1375
        %v1393 = vcombine.high %v1359, %v1375
        %v1395 = vunpack.c.l.s4 1934713408
        %v1396 = vunpack.c.0.s8 %v1395
        %v1397 = vlaneseq
        %v1398 = vshrl.u32 %v1397, 7
        %v1399 = vsub.s32 %v1396, %v1398
        %v1400 = vrot.slane %v1392, %v1399
        %v1402 = vunpack.c.l.s4 1934713408
        %v1403 = vunpack.c.0.s8 %v1402
        %v1404 = vlaneseq
        %v1405 = vshrl.u32 %v1404, 7
        %v1406 = vsub.s32 %v1403, %v1405
        %v1407 = vrot.slane %v1393, %v1406
        %v1408 = vcombine.high %v1384, 0.0
        %v1409 = vcombine.high %v1391, 0.0
        %v1410 = vcombine.high %v1400, 0.0
        %v1411 = vcombine.high %v1407, 0.0
        %1413 = vrot.lane.b32.xlu0 %v1340, 16
        %v1414 = vpop.permute.xlu0 %1413
        %1417 = vrot.lane.b32.xlu0 %v1323, 32
        %v1418 = vpop.permute.xlu0 %1417
        %1421 = vrot.lane.b32.xlu0 %v1341, 48
        %v1422 = vpop.permute.xlu0 %1421
        %1425 = vrot.lane.b32.xlu0 %v1332, 64
        %v1426 = vpop.permute.xlu0 %1425
        %1429 = vrot.lane.b32.xlu0 %v1342, 80
        %v1430 = vpop.permute.xlu0 %1429
        %1433 = vrot.lane.b32.xlu0 %v1339, 96
        %v1434 = vpop.permute.xlu0 %1433
        %1437 = vrot.lane.b32.xlu0 %v1343, 112
        %v1438 = vpop.permute.xlu0 %1437
        %1441 = vrot.lane.b32.xlu0 %v1408, 16
        %v1442 = vpop.permute.xlu0 %1441
        %1445 = vrot.lane.b32.xlu0 %v1391, 32
        %v1446 = vpop.permute.xlu0 %1445
        %1449 = vrot.lane.b32.xlu0 %v1409, 48
        %v1450 = vpop.permute.xlu0 %1449
        %1453 = vrot.lane.b32.xlu0 %v1400, 64
        %v1454 = vpop.permute.xlu0 %1453
        %1457 = vrot.lane.b32.xlu0 %v1410, 80
        %v1458 = vpop.permute.xlu0 %1457
        %1461 = vrot.lane.b32.xlu0 %v1407, 96
        %v1462 = vpop.permute.xlu0 %1461
        %1465 = vrot.lane.b32.xlu0 %v1411, 112
        %v1466 = vpop.permute.xlu0 %1465
        %v1468 = vsel %vm209, %v1316, %v1414
        %v1469 = vsel %vm838, %v1468, %v1418
        %v1470 = vsel %vm840, %v1469, %v1422
        %v1471 = vsel %vm842, %v1470, %v1426
        %v1472 = vsel %vm844, %v1471, %v1430
        %v1473 = vsel %vm846, %v1472, %v1434
        %v1474 = vsel %vm848, %v1473, %v1438
        %v1475 = vsel %vm209, %v1384, %v1442
        %v1476 = vsel %vm838, %v1475, %v1446
        %v1477 = vsel %vm840, %v1476, %v1450
        %v1478 = vsel %vm842, %v1477, %v1454
        %v1479 = vsel %vm844, %v1478, %v1458
        %v1480 = vsel %vm846, %v1479, %v1462
        %v1481 = vsel %vm848, %v1480, %v1466
        %vm1482 = vcmask 31744
        %v1484 = vsel %vm1482, %v864, 0
        %vm1486 = vcmask 1043456
        %v1488 = vsel %vm1486, %v1474, 0
        %v1491 = vsel %vm1486, %v1481, 0
        %1493 = vmatprep.subr.mxu0 0.0
        %1494 = vmatpush1.msra.mxu0 0.0
        %1495 = vmatprep.subr.mxu0 0.0
        %1496 = vmatpush1.msra.mxu0 0.0
        %1497 = vmatprep.subr.mxu0 0.0
        %1498 = vmatpush1.msra.mxu0 0.0
        %1499 = vmatprep.subr.mxu0 0.0
        %1500 = vmatpush1.msra.mxu0 0.0
        %1501 = vmatprep.subr.mxu0 0.0
        %1502 = vmatpush1.msra.mxu0 0.0
        %1503 = vmatprep.subr.mxu0 0.0
        %1504 = vmatpush1.msra.mxu0 0.0
        %1505 = vmatprep.subr.mxu0 0.0
        %1506 = vmatpush1.msra.mxu0 0.0
        %1507 = vmatprep.subr.mxu0 0.0
        %1508 = vmatpush1.msra.mxu0 0.0
        %1509 = vmatprep.subr.mxu0 0.0
        %1510 = vmatpush1.msra.mxu0 0.0
        %1511 = vmatprep.subr.mxu0 0.0
        %1512 = vmatpush1.msra.mxu0 0.0
        %1513 = vmatprep.subr.mxu0 0.0
        %1514 = vmatpush1.msra.mxu0 0.0
        %1515 = vmatprep.subr.mxu0 0.0
        %1516 = vmatpush1.msra.mxu0 0.0
        %1517 = vmatprep.subr.mxu0 0.0
        %1518 = vmatpush1.msra.mxu0 0.0
        %1519 = vmatprep.subr.mxu0 0.0
        %1520 = vmatpush1.msra.mxu0 0.0
        %1521 = vmatprep.subr.mxu0 0.0
        %1522 = vmatpush1.msra.mxu0 0.0
        %1523 = vmatprep.subr.mxu0 %v1491
        %1524 = vmatpush1.msra.mxu0 %v1488
        %1525 = vmatprep.subr.mxu0 0.0
        %1526 = vmatpush2.msra.mxu0 0.0
        %1527 = vmatprep.subr.mxu0 0.0
        %1528 = vmatpush2.msra.mxu0 0.0
        %1529 = vmatprep.subr.mxu0 0.0
        %1530 = vmatpush2.msra.mxu0 0.0
        %1531 = vmatprep.subr.mxu0 0.0
        %1532 = vmatpush2.msra.mxu0 0.0
        %1533 = vmatprep.subr.mxu0 0.0
        %1534 = vmatpush2.msra.mxu0 0.0
        %1535 = vmatprep.subr.mxu0 0.0
        %1536 = vmatpush2.msra.mxu0 0.0
        %1537 = vmatprep.subr.mxu0 0.0
        %1538 = vmatpush2.msra.mxu0 0.0
        %1539 = vmatprep.subr.mxu0 0.0
        %1540 = vmatpush2.msra.mxu0 0.0
        %1541 = vmatprep.subr.mxu0 0.0
        %1542 = vmatpush2.msra.mxu0 0.0
        %1543 = vmatprep.subr.mxu0 0.0
        %1544 = vmatpush2.msra.mxu0 0.0
        %1545 = vmatprep.subr.mxu0 0.0
        %1546 = vmatpush2.msra.mxu0 0.0
        %1547 = vmatprep.subr.mxu0 0.0
        %1548 = vmatpush2.msra.mxu0 0.0
        %1549 = vmatprep.subr.mxu0 0.0
        %1550 = vmatpush2.msra.mxu0 0.0
        %1551 = vmatprep.subr.mxu0 0.0
        %1552 = vmatpush2.msra.mxu0 0.0
        %1553 = vmatprep.subr.mxu0 0.0
        %1554 = vmatpush2.msra.mxu0 0.0
        %1555 = vmatprep.subr.mxu0 0.0
        %1556 = vmatpush2.msra.mxu0 0.0
        %1557 = vmatprep.mubr.f32.mxu0 0.0
        %1558 = vmatmul.mubr.f32.gmra.mxu0 %v1484
        %v1559 = vpop.f32.mrf.mxu0
        %v1560 = vadd.f32 0.0, %v1559
        %v1561 = vpop.f32.mrf.mxu0
        %v1562 = vadd.f32 0.0, %v1561
        %1563 = vdwg.mxu0
        %v1565 = vsel %vm1482, %v208, 0
        %v1568 = vsel %vm1486, %v849, 0
        %v1571 = vsel %vm1486, %v856, 0
        %1573 = vmatprep.subr.mxu0 0.0
        %1574 = vmatpush1.msra.mxu0 0.0
        %1575 = vmatprep.subr.mxu0 0.0
        %1576 = vmatpush1.msra.mxu0 0.0
        %1577 = vmatprep.subr.mxu0 0.0
        %1578 = vmatpush1.msra.mxu0 0.0
        %1579 = vmatprep.subr.mxu0 0.0
        %1580 = vmatpush1.msra.mxu0 0.0
        %1581 = vmatprep.subr.mxu0 0.0
        %1582 = vmatpush1.msra.mxu0 0.0
        %1583 = vmatprep.subr.mxu0 0.0
        %1584 = vmatpush1.msra.mxu0 0.0
        %1585 = vmatprep.subr.mxu0 0.0
        %1586 = vmatpush1.msra.mxu0 0.0
        %1587 = vmatprep.subr.mxu0 0.0
        %1588 = vmatpush1.msra.mxu0 0.0
        %1589 = vmatprep.subr.mxu0 0.0
        %1590 = vmatpush1.msra.mxu0 0.0
        %1591 = vmatprep.subr.mxu0 0.0
        %1592 = vmatpush1.msra.mxu0 0.0
        %1593 = vmatprep.subr.mxu0 0.0
        %1594 = vmatpush1.msra.mxu0 0.0
        %1595 = vmatprep.subr.mxu0 0.0
        %1596 = vmatpush1.msra.mxu0 0.0
        %1597 = vmatprep.subr.mxu0 0.0
        %1598 = vmatpush1.msra.mxu0 0.0
        %1599 = vmatprep.subr.mxu0 0.0
        %1600 = vmatpush1.msra.mxu0 0.0
        %1601 = vmatprep.subr.mxu0 0.0
        %1602 = vmatpush1.msra.mxu0 0.0
        %1603 = vmatprep.subr.mxu0 %v1571
        %1604 = vmatpush1.msra.mxu0 %v1568
        %1605 = vmatprep.subr.mxu0 0.0
        %1606 = vmatpush2.msra.mxu0 0.0
        %1607 = vmatprep.subr.mxu0 0.0
        %1608 = vmatpush2.msra.mxu0 0.0
        %1609 = vmatprep.subr.mxu0 0.0
        %1610 = vmatpush2.msra.mxu0 0.0
        %1611 = vmatprep.subr.mxu0 0.0
        %1612 = vmatpush2.msra.mxu0 0.0
        %1613 = vmatprep.subr.mxu0 0.0
        %1614 = vmatpush2.msra.mxu0 0.0
        %1615 = vmatprep.subr.mxu0 0.0
        %1616 = vmatpush2.msra.mxu0 0.0
        %1617 = vmatprep.subr.mxu0 0.0
        %1618 = vmatpush2.msra.mxu0 0.0
        %1619 = vmatprep.subr.mxu0 0.0
        %1620 = vmatpush2.msra.mxu0 0.0
        %1621 = vmatprep.subr.mxu0 0.0
        %1622 = vmatpush2.msra.mxu0 0.0
        %1623 = vmatprep.subr.mxu0 0.0
        %1624 = vmatpush2.msra.mxu0 0.0
        %1625 = vmatprep.subr.mxu0 0.0
        %1626 = vmatpush2.msra.mxu0 0.0
        %1627 = vmatprep.subr.mxu0 0.0
        %1628 = vmatpush2.msra.mxu0 0.0
        %1629 = vmatprep.subr.mxu0 0.0
        %1630 = vmatpush2.msra.mxu0 0.0
        %1631 = vmatprep.subr.mxu0 0.0
        %1632 = vmatpush2.msra.mxu0 0.0
        %1633 = vmatprep.subr.mxu0 0.0
        %1634 = vmatpush2.msra.mxu0 0.0
        %1635 = vmatprep.subr.mxu0 0.0
        %1636 = vmatpush2.msra.mxu0 0.0
        %1637 = vmatprep.mubr.f32.mxu0 0.0
        %1638 = vmatmul.mubr.f32.gmra.mxu0 %v1565
        %v1639 = vpop.f32.mrf.mxu0
        %v1640 = vadd.f32 %v1560, %v1639
        %v1641 = vpop.f32.mrf.mxu0
        %v1642 = vadd.f32 %v1562, %v1641
        %1643 = vdwg.mxu0
        %s1644 = scalar_lea.vmem %s1, 32
        %v1645 = vld [vmem:[%s1644] sm:$0xff]
        %v1646 = vld [vmem:[%s1644 + $0x8] sm:$0xff]
        %s1647 = scalar_lea.vmem %s2, 32
        %v1648 = vld [vmem:[%s1647] sm:$0xff]
        %v1649 = vld [vmem:[%s1647 + $0x8] sm:$0xff]
        %s1650 = scalar_lea.vmem %s3, 8
        %v1651 = vld [vmem:[%s1650] sm:$0xf]
        %1652 = vmatprep.subr.mxu0 0.0
        %1653 = vmatpush1.msra.mxu0 0.0
        %1654 = vmatprep.subr.mxu0 0.0
        %1655 = vmatpush1.msra.mxu0 0.0
        %1656 = vmatprep.subr.mxu0 0.0
        %1657 = vmatpush1.msra.mxu0 0.0
        %1658 = vmatprep.subr.mxu0 0.0
        %1659 = vmatpush1.msra.mxu0 0.0
        %1660 = vmatprep.subr.mxu0 0.0
        %1661 = vmatpush1.msra.mxu0 0.0
        %1662 = vmatprep.subr.mxu0 0.0
        %1663 = vmatpush1.msra.mxu0 0.0
        %1664 = vmatprep.subr.mxu0 0.0
        %1665 = vmatpush1.msra.mxu0 0.0
        %1666 = vmatprep.subr.mxu0 0.0
        %1667 = vmatpush1.msra.mxu0 0.0
        %1668 = vmatprep.subr.mxu0 0.0
        %1669 = vmatpush1.msra.mxu0 0.0
        %1670 = vmatprep.subr.mxu0 0.0
        %1671 = vmatpush1.msra.mxu0 0.0
        %1672 = vmatprep.subr.mxu0 0.0
        %1673 = vmatpush1.msra.mxu0 0.0
        %1674 = vmatprep.subr.mxu0 0.0
        %1675 = vmatpush1.msra.mxu0 0.0
        %1676 = vmatprep.subr.mxu0 0.0
        %1677 = vmatpush1.msra.mxu0 0.0
        %1678 = vmatprep.subr.mxu0 0.0
        %1679 = vmatpush1.msra.mxu0 0.0
        %1680 = vmatprep.subr.mxu0 0.0
        %1681 = vmatpush1.msra.mxu0 %v1646
        %1682 = vmatprep.subr.mxu0 0.0
        %1683 = vmatpush1.msra.mxu0 %v1645
        %1684 = vmatprep.subr.mxu0 0.0
        %1685 = vmatpush2.msra.mxu0 0.0
        %1686 = vmatprep.subr.mxu0 0.0
        %1687 = vmatpush2.msra.mxu0 0.0
        %1688 = vmatprep.subr.mxu0 0.0
        %1689 = vmatpush2.msra.mxu0 0.0
        %1690 = vmatprep.subr.mxu0 0.0
        %1691 = vmatpush2.msra.mxu0 0.0
        %1692 = vmatprep.subr.mxu0 0.0
        %1693 = vmatpush2.msra.mxu0 0.0
        %1694 = vmatprep.subr.mxu0 0.0
        %1695 = vmatpush2.msra.mxu0 0.0
        %1696 = vmatprep.subr.mxu0 0.0
        %1697 = vmatpush2.msra.mxu0 0.0
        %1698 = vmatprep.subr.mxu0 0.0
        %1699 = vmatpush2.msra.mxu0 0.0
        %1700 = vmatprep.subr.mxu0 0.0
        %1701 = vmatpush2.msra.mxu0 0.0
        %1702 = vmatprep.subr.mxu0 0.0
        %1703 = vmatpush2.msra.mxu0 0.0
        %1704 = vmatprep.subr.mxu0 0.0
        %1705 = vmatpush2.msra.mxu0 0.0
        %1706 = vmatprep.subr.mxu0 0.0
        %1707 = vmatpush2.msra.mxu0 0.0
        %1708 = vmatprep.subr.mxu0 0.0
        %1709 = vmatpush2.msra.mxu0 0.0
        %1710 = vmatprep.subr.mxu0 0.0
        %1711 = vmatpush2.msra.mxu0 0.0
        %1712 = vmatprep.subr.mxu0 0.0
        %1713 = vmatpush2.msra.mxu0 0.0
        %1714 = vmatprep.subr.mxu0 0.0
        %1715 = vmatpush2.msra.mxu0 0.0
        %1716 = vmatprep.mubr.f32.mxu0 0.0
        %1717 = vmatmul.mubr.f32.gmra.mxu0 %v211
        %v1718 = vpop.f32.mrf.mxu0
        %v1719 = vadd.f32 0.0, %v1718
        %v1720 = vpop.f32.mrf.mxu0
        %1721 = vmatprep.mubr.f32.mxu0 0.0
        %1722 = vmatmul.mubr.f32.gmra.mxu0 %v214
        %v1723 = vpop.f32.mrf.mxu0
        %v1724 = vadd.f32 0.0, %v1723
        %v1725 = vpop.f32.mrf.mxu0
        %1726 = vmatprep.mubr.f32.mxu0 0.0
        %1727 = vmatmul.mubr.f32.gmra.mxu0 %v217
        %v1728 = vpop.f32.mrf.mxu0
        %v1729 = vadd.f32 0.0, %v1728
        %v1730 = vpop.f32.mrf.mxu0
        %1731 = vmatprep.mubr.f32.mxu0 0.0
        %1732 = vmatmul.mubr.f32.gmra.mxu0 %v220
        %v1733 = vpop.f32.mrf.mxu0
        %v1734 = vadd.f32 0.0, %v1733
        %v1735 = vpop.f32.mrf.mxu0
        %1736 = vmatprep.mubr.f32.mxu0 0.0
        %1737 = vmatmul.mubr.f32.gmra.mxu0 %v223
        %v1738 = vpop.f32.mrf.mxu0
        %v1739 = vadd.f32 0.0, %v1738
        %v1740 = vpop.f32.mrf.mxu0
        %1741 = vmatprep.mubr.f32.mxu0 0.0
        %1742 = vmatmul.mubr.f32.gmra.mxu0 %v226
        %v1743 = vpop.f32.mrf.mxu0
        %v1744 = vadd.f32 0.0, %v1743
        %v1745 = vpop.f32.mrf.mxu0
        %1746 = vmatprep.mubr.f32.mxu0 0.0
        %1747 = vmatmul.mubr.f32.gmra.mxu0 %v229
        %v1748 = vpop.f32.mrf.mxu0
        %v1749 = vadd.f32 0.0, %v1748
        %v1750 = vpop.f32.mrf.mxu0
        %1751 = vmatprep.mubr.f32.mxu0 0.0
        %1752 = vmatmul.mubr.f32.gmra.mxu0 %v232
        %v1753 = vpop.f32.mrf.mxu0
        %v1754 = vadd.f32 0.0, %v1753
        %v1755 = vpop.f32.mrf.mxu0
        %1756 = vdwg.mxu0
        %v1758 = vsel %vm209, %v1648, 0
        %v1761 = vsel %vm209, %v1649, 0
        %1763 = vmatprep.subr.mxu0 0.0
        %1764 = vmatpush1.msra.mxu0 0.0
        %1765 = vmatprep.subr.mxu0 0.0
        %1766 = vmatpush1.msra.mxu0 0.0
        %1767 = vmatprep.subr.mxu0 0.0
        %1768 = vmatpush1.msra.mxu0 0.0
        %1769 = vmatprep.subr.mxu0 0.0
        %1770 = vmatpush1.msra.mxu0 0.0
        %1771 = vmatprep.subr.mxu0 0.0
        %1772 = vmatpush1.msra.mxu0 0.0
        %1773 = vmatprep.subr.mxu0 0.0
        %1774 = vmatpush1.msra.mxu0 0.0
        %1775 = vmatprep.subr.mxu0 0.0
        %1776 = vmatpush1.msra.mxu0 0.0
        %1777 = vmatprep.subr.mxu0 0.0
        %1778 = vmatpush1.msra.mxu0 0.0
        %1779 = vmatprep.subr.mxu0 0.0
        %1780 = vmatpush1.msra.mxu0 0.0
        %1781 = vmatprep.subr.mxu0 0.0
        %1782 = vmatpush1.msra.mxu0 0.0
        %1783 = vmatprep.subr.mxu0 0.0
        %1784 = vmatpush1.msra.mxu0 0.0
        %1785 = vmatprep.subr.mxu0 0.0
        %1786 = vmatpush1.msra.mxu0 0.0
        %1787 = vmatprep.subr.mxu0 0.0
        %1788 = vmatpush1.msra.mxu0 0.0
        %1789 = vmatprep.subr.mxu0 0.0
        %1790 = vmatpush1.msra.mxu0 0.0
        %1791 = vmatprep.subr.mxu0 0.0
        %1792 = vmatpush1.msra.mxu0 %v1724
        %1793 = vmatprep.subr.mxu0 0.0
        %1794 = vmatpush1.msra.mxu0 %v1719
        %1795 = vmatprep.subr.mxu0 0.0
        %1796 = vmatpush2.msra.mxu0 0.0
        %1797 = vmatprep.subr.mxu0 0.0
        %1798 = vmatpush2.msra.mxu0 0.0
        %1799 = vmatprep.subr.mxu0 0.0
        %1800 = vmatpush2.msra.mxu0 0.0
        %1801 = vmatprep.subr.mxu0 0.0
        %1802 = vmatpush2.msra.mxu0 0.0
        %1803 = vmatprep.subr.mxu0 0.0
        %1804 = vmatpush2.msra.mxu0 0.0
        %1805 = vmatprep.subr.mxu0 0.0
        %1806 = vmatpush2.msra.mxu0 0.0
        %1807 = vmatprep.subr.mxu0 0.0
        %1808 = vmatpush2.msra.mxu0 0.0
        %1809 = vmatprep.subr.mxu0 0.0
        %1810 = vmatpush2.msra.mxu0 0.0
        %1811 = vmatprep.subr.mxu0 0.0
        %1812 = vmatpush2.msra.mxu0 0.0
        %1813 = vmatprep.subr.mxu0 0.0
        %1814 = vmatpush2.msra.mxu0 0.0
        %1815 = vmatprep.subr.mxu0 0.0
        %1816 = vmatpush2.msra.mxu0 0.0
        %1817 = vmatprep.subr.mxu0 0.0
        %1818 = vmatpush2.msra.mxu0 0.0
        %1819 = vmatprep.subr.mxu0 0.0
        %1820 = vmatpush2.msra.mxu0 0.0
        %1821 = vmatprep.subr.mxu0 0.0
        %1822 = vmatpush2.msra.mxu0 0.0
        %1823 = vmatprep.subr.mxu0 0.0
        %1824 = vmatpush2.msra.mxu0 0.0
        %1825 = vmatprep.subr.mxu0 0.0
        %1826 = vmatpush2.msra.mxu0 0.0
        %1827 = vmatprep.mubr.f32.mxu0 0.0
        %1828 = vmatmul.mubr.f32.gmra.mxu0 %v1758
        %v1829 = vpop.f32.mrf.mxu0
        %v1830 = vadd.f32 0.0, %v1829
        %v1831 = vpop.f32.mrf.mxu0
        %1832 = vmatprep.mubr.f32.mxu0 0.0
        %1833 = vmatmul.mubr.f32.gmra.mxu0 %v1761
        %v1834 = vpop.f32.mrf.mxu0
        %v1835 = vadd.f32 0.0, %v1834
        %v1836 = vpop.f32.mrf.mxu0
        %1837 = vdwg.mxu0
        %1838 = vmatprep.subr.mxu0 0.0
        %1839 = vmatpush1.msra.mxu0 0.0
        %1840 = vmatprep.subr.mxu0 0.0
        %1841 = vmatpush1.msra.mxu0 0.0
        %1842 = vmatprep.subr.mxu0 0.0
        %1843 = vmatpush1.msra.mxu0 0.0
        %1844 = vmatprep.subr.mxu0 0.0
        %1845 = vmatpush1.msra.mxu0 0.0
        %1846 = vmatprep.subr.mxu0 0.0
        %1847 = vmatpush1.msra.mxu0 0.0
        %1848 = vmatprep.subr.mxu0 0.0
        %1849 = vmatpush1.msra.mxu0 0.0
        %1850 = vmatprep.subr.mxu0 0.0
        %1851 = vmatpush1.msra.mxu0 0.0
        %1852 = vmatprep.subr.mxu0 0.0
        %1853 = vmatpush1.msra.mxu0 0.0
        %1854 = vmatprep.subr.mxu0 0.0
        %1855 = vmatpush1.msra.mxu0 0.0
        %1856 = vmatprep.subr.mxu0 0.0
        %1857 = vmatpush1.msra.mxu0 0.0
        %1858 = vmatprep.subr.mxu0 0.0
        %1859 = vmatpush1.msra.mxu0 0.0
        %1860 = vmatprep.subr.mxu0 0.0
        %1861 = vmatpush1.msra.mxu0 0.0
        %1862 = vmatprep.subr.mxu0 0.0
        %1863 = vmatpush1.msra.mxu0 0.0
        %1864 = vmatprep.subr.mxu0 0.0
        %1865 = vmatpush1.msra.mxu0 0.0
        %1866 = vmatprep.subr.mxu0 0.0
        %1867 = vmatpush1.msra.mxu0 %v1734
        %1868 = vmatprep.subr.mxu0 0.0
        %1869 = vmatpush1.msra.mxu0 %v1729
        %1870 = vmatprep.subr.mxu0 0.0
        %1871 = vmatpush2.msra.mxu0 0.0
        %1872 = vmatprep.subr.mxu0 0.0
        %1873 = vmatpush2.msra.mxu0 0.0
        %1874 = vmatprep.subr.mxu0 0.0
        %1875 = vmatpush2.msra.mxu0 0.0
        %1876 = vmatprep.subr.mxu0 0.0
        %1877 = vmatpush2.msra.mxu0 0.0
        %1878 = vmatprep.subr.mxu0 0.0
        %1879 = vmatpush2.msra.mxu0 0.0
        %1880 = vmatprep.subr.mxu0 0.0
        %1881 = vmatpush2.msra.mxu0 0.0
        %1882 = vmatprep.subr.mxu0 0.0
        %1883 = vmatpush2.msra.mxu0 0.0
        %1884 = vmatprep.subr.mxu0 0.0
        %1885 = vmatpush2.msra.mxu0 0.0
        %1886 = vmatprep.subr.mxu0 0.0
        %1887 = vmatpush2.msra.mxu0 0.0
        %1888 = vmatprep.subr.mxu0 0.0
        %1889 = vmatpush2.msra.mxu0 0.0
        %1890 = vmatprep.subr.mxu0 0.0
        %1891 = vmatpush2.msra.mxu0 0.0
        %1892 = vmatprep.subr.mxu0 0.0
        %1893 = vmatpush2.msra.mxu0 0.0
        %1894 = vmatprep.subr.mxu0 0.0
        %1895 = vmatpush2.msra.mxu0 0.0
        %1896 = vmatprep.subr.mxu0 0.0
        %1897 = vmatpush2.msra.mxu0 0.0
        %1898 = vmatprep.subr.mxu0 0.0
        %1899 = vmatpush2.msra.mxu0 0.0
        %1900 = vmatprep.subr.mxu0 0.0
        %1901 = vmatpush2.msra.mxu0 0.0
        %1902 = vmatprep.mubr.f32.mxu0 0.0
        %1903 = vmatmul.mubr.f32.gmra.mxu0 %v1758
        %v1904 = vpop.f32.mrf.mxu0
        %v1905 = vadd.f32 0.0, %v1904
        %v1906 = vpop.f32.mrf.mxu0
        %1907 = vmatprep.mubr.f32.mxu0 0.0
        %1908 = vmatmul.mubr.f32.gmra.mxu0 %v1761
        %v1909 = vpop.f32.mrf.mxu0
        %v1910 = vadd.f32 0.0, %v1909
        %v1911 = vpop.f32.mrf.mxu0
        %1912 = vdwg.mxu0
        %1913 = vmatprep.subr.mxu0 0.0
        %1914 = vmatpush1.msra.mxu0 0.0
        %1915 = vmatprep.subr.mxu0 0.0
        %1916 = vmatpush1.msra.mxu0 0.0
        %1917 = vmatprep.subr.mxu0 0.0
        %1918 = vmatpush1.msra.mxu0 0.0
        %1919 = vmatprep.subr.mxu0 0.0
        %1920 = vmatpush1.msra.mxu0 0.0
        %1921 = vmatprep.subr.mxu0 0.0
        %1922 = vmatpush1.msra.mxu0 0.0
        %1923 = vmatprep.subr.mxu0 0.0
        %1924 = vmatpush1.msra.mxu0 0.0
        %1925 = vmatprep.subr.mxu0 0.0
        %1926 = vmatpush1.msra.mxu0 0.0
        %1927 = vmatprep.subr.mxu0 0.0
        %1928 = vmatpush1.msra.mxu0 0.0
        %1929 = vmatprep.subr.mxu0 0.0
        %1930 = vmatpush1.msra.mxu0 0.0
        %1931 = vmatprep.subr.mxu0 0.0
        %1932 = vmatpush1.msra.mxu0 0.0
        %1933 = vmatprep.subr.mxu0 0.0
        %1934 = vmatpush1.msra.mxu0 0.0
        %1935 = vmatprep.subr.mxu0 0.0
        %1936 = vmatpush1.msra.mxu0 0.0
        %1937 = vmatprep.subr.mxu0 0.0
        %1938 = vmatpush1.msra.mxu0 0.0
        %1939 = vmatprep.subr.mxu0 0.0
        %1940 = vmatpush1.msra.mxu0 0.0
        %1941 = vmatprep.subr.mxu0 0.0
        %1942 = vmatpush1.msra.mxu0 %v1744
        %1943 = vmatprep.subr.mxu0 0.0
        %1944 = vmatpush1.msra.mxu0 %v1739
        %1945 = vmatprep.subr.mxu0 0.0
        %1946 = vmatpush2.msra.mxu0 0.0
        %1947 = vmatprep.subr.mxu0 0.0
        %1948 = vmatpush2.msra.mxu0 0.0
        %1949 = vmatprep.subr.mxu0 0.0
        %1950 = vmatpush2.msra.mxu0 0.0
        %1951 = vmatprep.subr.mxu0 0.0
        %1952 = vmatpush2.msra.mxu0 0.0
        %1953 = vmatprep.subr.mxu0 0.0
        %1954 = vmatpush2.msra.mxu0 0.0
        %1955 = vmatprep.subr.mxu0 0.0
        %1956 = vmatpush2.msra.mxu0 0.0
        %1957 = vmatprep.subr.mxu0 0.0
        %1958 = vmatpush2.msra.mxu0 0.0
        %1959 = vmatprep.subr.mxu0 0.0
        %1960 = vmatpush2.msra.mxu0 0.0
        %1961 = vmatprep.subr.mxu0 0.0
        %1962 = vmatpush2.msra.mxu0 0.0
        %1963 = vmatprep.subr.mxu0 0.0
        %1964 = vmatpush2.msra.mxu0 0.0
        %1965 = vmatprep.subr.mxu0 0.0
        %1966 = vmatpush2.msra.mxu0 0.0
        %1967 = vmatprep.subr.mxu0 0.0
        %1968 = vmatpush2.msra.mxu0 0.0
        %1969 = vmatprep.subr.mxu0 0.0
        %1970 = vmatpush2.msra.mxu0 0.0
        %1971 = vmatprep.subr.mxu0 0.0
        %1972 = vmatpush2.msra.mxu0 0.0
        %1973 = vmatprep.subr.mxu0 0.0
        %1974 = vmatpush2.msra.mxu0 0.0
        %1975 = vmatprep.subr.mxu0 0.0
        %1976 = vmatpush2.msra.mxu0 0.0
        %1977 = vmatprep.mubr.f32.mxu0 0.0
        %1978 = vmatmul.mubr.f32.gmra.mxu0 %v1758
        %v1979 = vpop.f32.mrf.mxu0
        %v1980 = vadd.f32 0.0, %v1979
        %v1981 = vpop.f32.mrf.mxu0
        %1982 = vmatprep.mubr.f32.mxu0 0.0
        %1983 = vmatmul.mubr.f32.gmra.mxu0 %v1761
        %v1984 = vpop.f32.mrf.mxu0
        %v1985 = vadd.f32 0.0, %v1984
        %v1986 = vpop.f32.mrf.mxu0
        %1987 = vdwg.mxu0
        %1988 = vmatprep.subr.mxu0 0.0
        %1989 = vmatpush1.msra.mxu0 0.0
        %1990 = vmatprep.subr.mxu0 0.0
        %1991 = vmatpush1.msra.mxu0 0.0
        %1992 = vmatprep.subr.mxu0 0.0
        %1993 = vmatpush1.msra.mxu0 0.0
        %1994 = vmatprep.subr.mxu0 0.0
        %1995 = vmatpush1.msra.mxu0 0.0
        %1996 = vmatprep.subr.mxu0 0.0
        %1997 = vmatpush1.msra.mxu0 0.0
        %1998 = vmatprep.subr.mxu0 0.0
        %1999 = vmatpush1.msra.mxu0 0.0
        %2000 = vmatprep.subr.mxu0 0.0
        %2001 = vmatpush1.msra.mxu0 0.0
        %2002 = vmatprep.subr.mxu0 0.0
        %2003 = vmatpush1.msra.mxu0 0.0
        %2004 = vmatprep.subr.mxu0 0.0
        %2005 = vmatpush1.msra.mxu0 0.0
        %2006 = vmatprep.subr.mxu0 0.0
        %2007 = vmatpush1.msra.mxu0 0.0
        %2008 = vmatprep.subr.mxu0 0.0
        %2009 = vmatpush1.msra.mxu0 0.0
        %2010 = vmatprep.subr.mxu0 0.0
        %2011 = vmatpush1.msra.mxu0 0.0
        %2012 = vmatprep.subr.mxu0 0.0
        %2013 = vmatpush1.msra.mxu0 0.0
        %2014 = vmatprep.subr.mxu0 0.0
        %2015 = vmatpush1.msra.mxu0 0.0
        %2016 = vmatprep.subr.mxu0 0.0
        %2017 = vmatpush1.msra.mxu0 %v1754
        %2018 = vmatprep.subr.mxu0 0.0
        %2019 = vmatpush1.msra.mxu0 %v1749
        %2020 = vmatprep.subr.mxu0 0.0
        %2021 = vmatpush2.msra.mxu0 0.0
        %2022 = vmatprep.subr.mxu0 0.0
        %2023 = vmatpush2.msra.mxu0 0.0
        %2024 = vmatprep.subr.mxu0 0.0
        %2025 = vmatpush2.msra.mxu0 0.0
        %2026 = vmatprep.subr.mxu0 0.0
        %2027 = vmatpush2.msra.mxu0 0.0
        %2028 = vmatprep.subr.mxu0 0.0
        %2029 = vmatpush2.msra.mxu0 0.0
        %2030 = vmatprep.subr.mxu0 0.0
        %2031 = vmatpush2.msra.mxu0 0.0
        %2032 = vmatprep.subr.mxu0 0.0
        %2033 = vmatpush2.msra.mxu0 0.0
        %2034 = vmatprep.subr.mxu0 0.0
        %2035 = vmatpush2.msra.mxu0 0.0
        %2036 = vmatprep.subr.mxu0 0.0
        %2037 = vmatpush2.msra.mxu0 0.0
        %2038 = vmatprep.subr.mxu0 0.0
        %2039 = vmatpush2.msra.mxu0 0.0
        %2040 = vmatprep.subr.mxu0 0.0
        %2041 = vmatpush2.msra.mxu0 0.0
        %2042 = vmatprep.subr.mxu0 0.0
        %2043 = vmatpush2.msra.mxu0 0.0
        %2044 = vmatprep.subr.mxu0 0.0
        %2045 = vmatpush2.msra.mxu0 0.0
        %2046 = vmatprep.subr.mxu0 0.0
        %2047 = vmatpush2.msra.mxu0 0.0
        %2048 = vmatprep.subr.mxu0 0.0
        %2049 = vmatpush2.msra.mxu0 0.0
        %2050 = vmatprep.subr.mxu0 0.0
        %2051 = vmatpush2.msra.mxu0 0.0
        %2052 = vmatprep.mubr.f32.mxu0 0.0
        %2053 = vmatmul.mubr.f32.gmra.mxu0 %v1758
        %v2054 = vpop.f32.mrf.mxu0
        %v2055 = vadd.f32 0.0, %v2054
        %v2056 = vpop.f32.mrf.mxu0
        %2057 = vmatprep.mubr.f32.mxu0 0.0
        %2058 = vmatmul.mubr.f32.gmra.mxu0 %v1761
        %v2059 = vpop.f32.mrf.mxu0
        %v2060 = vadd.f32 0.0, %v2059
        %v2061 = vpop.f32.mrf.mxu0
        %2062 = vdwg.mxu0
        %v2063 = vcombine.low %v1830, %v1980
        %v2064 = vcombine.high %v1830, %v1980
        %v2066 = vunpack.c.l.s4 1983009808
        %v2067 = vunpack.c.0.s8 %v2066
        %v2068 = vlaneseq
        %v2069 = vshrl.u32 %v2068, 7
        %v2070 = vsub.s32 %v2067, %v2069
        %v2071 = vrot.slane %v2063, %v2070
        %v2073 = vunpack.c.l.s4 1983009808
        %v2074 = vunpack.c.0.s8 %v2073
        %v2075 = vlaneseq
        %v2076 = vshrl.u32 %v2075, 7
        %v2077 = vsub.s32 %v2074, %v2076
        %v2078 = vrot.slane %v2064, %v2077
        %v2079 = vcombine.low %v1905, %v2055
        %v2080 = vcombine.high %v1905, %v2055
        %v2082 = vunpack.c.l.s4 1983009808
        %v2083 = vunpack.c.0.s8 %v2082
        %v2084 = vlaneseq
        %v2085 = vshrl.u32 %v2084, 7
        %v2086 = vsub.s32 %v2083, %v2085
        %v2087 = vrot.slane %v2079, %v2086
        %v2089 = vunpack.c.l.s4 1983009808
        %v2090 = vunpack.c.0.s8 %v2089
        %v2091 = vlaneseq
        %v2092 = vshrl.u32 %v2091, 7
        %v2093 = vsub.s32 %v2090, %v2092
        %v2094 = vrot.slane %v2080, %v2093
        %v2095 = vcombine.low %v2071, %v2087
        %v2096 = vcombine.high %v2071, %v2087
        %v2098 = vunpack.c.l.s4 1934713408
        %v2099 = vunpack.c.0.s8 %v2098
        %v2100 = vlaneseq
        %v2101 = vshrl.u32 %v2100, 7
        %v2102 = vsub.s32 %v2099, %v2101
        %v2103 = vrot.slane %v2095, %v2102
        %v2105 = vunpack.c.l.s4 1934713408
        %v2106 = vunpack.c.0.s8 %v2105
        %v2107 = vlaneseq
        %v2108 = vshrl.u32 %v2107, 7
        %v2109 = vsub.s32 %v2106, %v2108
        %v2110 = vrot.slane %v2096, %v2109
        %v2111 = vcombine.low %v2078, %v2094
        %v2112 = vcombine.high %v2078, %v2094
        %v2114 = vunpack.c.l.s4 1934713408
        %v2115 = vunpack.c.0.s8 %v2114
        %v2116 = vlaneseq
        %v2117 = vshrl.u32 %v2116, 7
        %v2118 = vsub.s32 %v2115, %v2117
        %v2119 = vrot.slane %v2111, %v2118
        %v2121 = vunpack.c.l.s4 1934713408
        %v2122 = vunpack.c.0.s8 %v2121
        %v2123 = vlaneseq
        %v2124 = vshrl.u32 %v2123, 7
        %v2125 = vsub.s32 %v2122, %v2124
        %v2126 = vrot.slane %v2112, %v2125
        %v2127 = vcombine.high %v2103, 0.0
        %v2128 = vcombine.high %v2110, 0.0
        %v2129 = vcombine.high %v2119, 0.0
        %v2130 = vcombine.high %v2126, 0.0
        %v2131 = vcombine.low %v1835, %v1985
        %v2132 = vcombine.high %v1835, %v1985
        %v2134 = vunpack.c.l.s4 1983009808
        %v2135 = vunpack.c.0.s8 %v2134
        %v2136 = vlaneseq
        %v2137 = vshrl.u32 %v2136, 7
        %v2138 = vsub.s32 %v2135, %v2137
        %v2139 = vrot.slane %v2131, %v2138
        %v2141 = vunpack.c.l.s4 1983009808
        %v2142 = vunpack.c.0.s8 %v2141
        %v2143 = vlaneseq
        %v2144 = vshrl.u32 %v2143, 7
        %v2145 = vsub.s32 %v2142, %v2144
        %v2146 = vrot.slane %v2132, %v2145
        %v2147 = vcombine.low %v1910, %v2060
        %v2148 = vcombine.high %v1910, %v2060
        %v2150 = vunpack.c.l.s4 1983009808
        %v2151 = vunpack.c.0.s8 %v2150
        %v2152 = vlaneseq
        %v2153 = vshrl.u32 %v2152, 7
        %v2154 = vsub.s32 %v2151, %v2153
        %v2155 = vrot.slane %v2147, %v2154
        %v2157 = vunpack.c.l.s4 1983009808
        %v2158 = vunpack.c.0.s8 %v2157
        %v2159 = vlaneseq
        %v2160 = vshrl.u32 %v2159, 7
        %v2161 = vsub.s32 %v2158, %v2160
        %v2162 = vrot.slane %v2148, %v2161
        %v2163 = vcombine.low %v2139, %v2155
        %v2164 = vcombine.high %v2139, %v2155
        %v2166 = vunpack.c.l.s4 1934713408
        %v2167 = vunpack.c.0.s8 %v2166
        %v2168 = vlaneseq
        %v2169 = vshrl.u32 %v2168, 7
        %v2170 = vsub.s32 %v2167, %v2169
        %v2171 = vrot.slane %v2163, %v2170
        %v2173 = vunpack.c.l.s4 1934713408
        %v2174 = vunpack.c.0.s8 %v2173
        %v2175 = vlaneseq
        %v2176 = vshrl.u32 %v2175, 7
        %v2177 = vsub.s32 %v2174, %v2176
        %v2178 = vrot.slane %v2164, %v2177
        %v2179 = vcombine.low %v2146, %v2162
        %v2180 = vcombine.high %v2146, %v2162
        %v2182 = vunpack.c.l.s4 1934713408
        %v2183 = vunpack.c.0.s8 %v2182
        %v2184 = vlaneseq
        %v2185 = vshrl.u32 %v2184, 7
        %v2186 = vsub.s32 %v2183, %v2185
        %v2187 = vrot.slane %v2179, %v2186
        %v2189 = vunpack.c.l.s4 1934713408
        %v2190 = vunpack.c.0.s8 %v2189
        %v2191 = vlaneseq
        %v2192 = vshrl.u32 %v2191, 7
        %v2193 = vsub.s32 %v2190, %v2192
        %v2194 = vrot.slane %v2180, %v2193
        %v2195 = vcombine.high %v2171, 0.0
        %v2196 = vcombine.high %v2178, 0.0
        %v2197 = vcombine.high %v2187, 0.0
        %v2198 = vcombine.high %v2194, 0.0
        %2200 = vrot.lane.b32.xlu0 %v2127, 16
        %v2201 = vpop.permute.xlu0 %2200
        %2204 = vrot.lane.b32.xlu0 %v2110, 32
        %v2205 = vpop.permute.xlu0 %2204
        %2208 = vrot.lane.b32.xlu0 %v2128, 48
        %v2209 = vpop.permute.xlu0 %2208
        %2212 = vrot.lane.b32.xlu0 %v2119, 64
        %v2213 = vpop.permute.xlu0 %2212
        %2216 = vrot.lane.b32.xlu0 %v2129, 80
        %v2217 = vpop.permute.xlu0 %2216
        %2220 = vrot.lane.b32.xlu0 %v2126, 96
        %v2221 = vpop.permute.xlu0 %2220
        %2224 = vrot.lane.b32.xlu0 %v2130, 112
        %v2225 = vpop.permute.xlu0 %2224
        %2228 = vrot.lane.b32.xlu0 %v2195, 16
        %v2229 = vpop.permute.xlu0 %2228
        %2232 = vrot.lane.b32.xlu0 %v2178, 32
        %v2233 = vpop.permute.xlu0 %2232
        %2236 = vrot.lane.b32.xlu0 %v2196, 48
        %v2237 = vpop.permute.xlu0 %2236
        %2240 = vrot.lane.b32.xlu0 %v2187, 64
        %v2241 = vpop.permute.xlu0 %2240
        %2244 = vrot.lane.b32.xlu0 %v2197, 80
        %v2245 = vpop.permute.xlu0 %2244
        %2248 = vrot.lane.b32.xlu0 %v2194, 96
        %v2249 = vpop.permute.xlu0 %2248
        %2252 = vrot.lane.b32.xlu0 %v2198, 112
        %v2253 = vpop.permute.xlu0 %2252
        %v2255 = vsel %vm209, %v2103, %v2201
        %v2256 = vsel %vm838, %v2255, %v2205
        %v2257 = vsel %vm840, %v2256, %v2209
        %v2258 = vsel %vm842, %v2257, %v2213
        %v2259 = vsel %vm844, %v2258, %v2217
        %v2260 = vsel %vm846, %v2259, %v2221
        %v2261 = vsel %vm848, %v2260, %v2225
        %v2262 = vsel %vm209, %v2171, %v2229
        %v2263 = vsel %vm838, %v2262, %v2233
        %v2264 = vsel %vm840, %v2263, %v2237
        %v2265 = vsel %vm842, %v2264, %v2241
        %v2266 = vsel %vm844, %v2265, %v2245
        %v2267 = vsel %vm846, %v2266, %v2249
        %v2268 = vsel %vm848, %v2267, %v2253
        %v2270 = vsel %vm1482, %v1651, 0
        %v2273 = vsel %vm1486, %v2261, 0
        %v2276 = vsel %vm1486, %v2268, 0
        %2278 = vmatprep.subr.mxu0 0.0
        %2279 = vmatpush1.msra.mxu0 0.0
        %2280 = vmatprep.subr.mxu0 0.0
        %2281 = vmatpush1.msra.mxu0 0.0
        %2282 = vmatprep.subr.mxu0 0.0
        %2283 = vmatpush1.msra.mxu0 0.0
        %2284 = vmatprep.subr.mxu0 0.0
        %2285 = vmatpush1.msra.mxu0 0.0
        %2286 = vmatprep.subr.mxu0 0.0
        %2287 = vmatpush1.msra.mxu0 0.0
        %2288 = vmatprep.subr.mxu0 0.0
        %2289 = vmatpush1.msra.mxu0 0.0
        %2290 = vmatprep.subr.mxu0 0.0
        %2291 = vmatpush1.msra.mxu0 0.0
        %2292 = vmatprep.subr.mxu0 0.0
        %2293 = vmatpush1.msra.mxu0 0.0
        %2294 = vmatprep.subr.mxu0 0.0
        %2295 = vmatpush1.msra.mxu0 0.0
        %2296 = vmatprep.subr.mxu0 0.0
        %2297 = vmatpush1.msra.mxu0 0.0
        %2298 = vmatprep.subr.mxu0 0.0
        %2299 = vmatpush1.msra.mxu0 0.0
        %2300 = vmatprep.subr.mxu0 0.0
        %2301 = vmatpush1.msra.mxu0 0.0
        %2302 = vmatprep.subr.mxu0 0.0
        %2303 = vmatpush1.msra.mxu0 0.0
        %2304 = vmatprep.subr.mxu0 0.0
        %2305 = vmatpush1.msra.mxu0 0.0
        %2306 = vmatprep.subr.mxu0 0.0
        %2307 = vmatpush1.msra.mxu0 0.0
        %2308 = vmatprep.subr.mxu0 %v2276
        %2309 = vmatpush1.msra.mxu0 %v2273
        %2310 = vmatprep.subr.mxu0 0.0
        %2311 = vmatpush2.msra.mxu0 0.0
        %2312 = vmatprep.subr.mxu0 0.0
        %2313 = vmatpush2.msra.mxu0 0.0
        %2314 = vmatprep.subr.mxu0 0.0
        %2315 = vmatpush2.msra.mxu0 0.0
        %2316 = vmatprep.subr.mxu0 0.0
        %2317 = vmatpush2.msra.mxu0 0.0
        %2318 = vmatprep.subr.mxu0 0.0
        %2319 = vmatpush2.msra.mxu0 0.0
        %2320 = vmatprep.subr.mxu0 0.0
        %2321 = vmatpush2.msra.mxu0 0.0
        %2322 = vmatprep.subr.mxu0 0.0
        %2323 = vmatpush2.msra.mxu0 0.0
        %2324 = vmatprep.subr.mxu0 0.0
        %2325 = vmatpush2.msra.mxu0 0.0
        %2326 = vmatprep.subr.mxu0 0.0
        %2327 = vmatpush2.msra.mxu0 0.0
        %2328 = vmatprep.subr.mxu0 0.0
        %2329 = vmatpush2.msra.mxu0 0.0
        %2330 = vmatprep.subr.mxu0 0.0
        %2331 = vmatpush2.msra.mxu0 0.0
        %2332 = vmatprep.subr.mxu0 0.0
        %2333 = vmatpush2.msra.mxu0 0.0
        %2334 = vmatprep.subr.mxu0 0.0
        %2335 = vmatpush2.msra.mxu0 0.0
        %2336 = vmatprep.subr.mxu0 0.0
        %2337 = vmatpush2.msra.mxu0 0.0
        %2338 = vmatprep.subr.mxu0 0.0
        %2339 = vmatpush2.msra.mxu0 0.0
        %2340 = vmatprep.subr.mxu0 0.0
        %2341 = vmatpush2.msra.mxu0 0.0
        %2342 = vmatprep.mubr.f32.mxu0 0.0
        %2343 = vmatmul.mubr.f32.gmra.mxu0 %v2270
        %v2344 = vpop.f32.mrf.mxu0
        %v2345 = vadd.f32 0.0, %v2344
        %v2346 = vpop.f32.mrf.mxu0
        %v2347 = vadd.f32 0.0, %v2346
        %2348 = vdwg.mxu0
        %v2349 = vadd.f32 %v1640, %v2345
        %v2350 = vadd.f32 %v1642, %v2347
        %v2353 = vcombine.low %v2349, %v2350
        %2355 = vst [vmem:[%s190] sm:$0xff] %v2353
        %s2356 = sand.u32 %s115, 1
        %s2357 = scalar_lea.sflag [#allocation3], %s2356
        %s2358 = sand.u32 %s115, 1
        %s2359 = smul.addr %s2358, 8
        %s2360 = scalar_lea.vmem [#allocation2], %s2359
        // Predicated region
        $region37: #{tpu_custom_call.1} parent=35 // pred_check
          %p2361 = pneg %p125
        $region38: #{tpu_custom_call.1} parent=35 // pred_check_branch
          %2363 = sbr.rel (%p2361) target = $region40
        $region39: #{tpu_custom_call.1} parent=35 // pred_region
          %s2365 = ssub.s32 128, 128
          %2366 = vsyncadd %s2357, %s2365
          %s2367 = smul.addr %s18, 2
          %s2368 = smul.addr %s2367, 64
          %s2369 = scalar_lea.hbm %s4, %s2368
          %s2371 = sshll.u32 %s2360, 4
          %s2372 = int_to_ptr.vmem [resolvable:$true] %s2371
          %2374 = dma.vmem_to_hbm [thread:$0]  %s2372, 128, %s2369, %s2357
        $region40: #{tpu_custom_call.1} parent=35 // pred_fallthru
          _
      $region36: #{tpu_custom_call.1} parent=5 // pred_fallthru
        _
      %p2375 = scmp.le.s32.totalorder 2, %s13
      // Predicated region
      $region41: #{tpu_custom_call.1} parent=5 // pred_check
        %p2376 = pneg %p2375
      $region42: #{tpu_custom_call.1} parent=5 // pred_check_branch
        %2378 = sbr.rel (%p2376) target = $region44
      $region43: #{tpu_custom_call.1} parent=5 // pred_region
        %s2379 = ssub.s32 %s13, 2
        // Predicated region
        $region45: #{tpu_custom_call.1} parent=43 // pred_check
          %p2380 = pneg %p131
        $region46: #{tpu_custom_call.1} parent=43 // pred_check_branch
          %2382 = sbr.rel (%p2380) target = $region48
        $region47: #{tpu_custom_call.1} parent=43 // pred_region
          %s2383 = sand.u32 %s116, 1
          %s2384 = scalar_lea.sflag [#allocation3], %s2383
          %s2385 = sand.u32 %s116, 1
          %s2386 = smul.addr %s2385, 8
          %s2387 = scalar_lea.vmem [#allocation2], %s2386
          %2388 = dma.done %s2384, 128
        $region48: #{tpu_custom_call.1} parent=43 // pred_fallthru
          _
      $region44: #{tpu_custom_call.1} parent=5 // pred_fallthru
        _
    $region6: #{tpu_custom_call.1} parent=1 // loop_footer
      %s17 = sadd.s32 1, %s13
    $region7: #{tpu_custom_call.1} parent=1 // loop_footer_branch
      %12 = sbr.rel target = $region3
    $region8: #{tpu_custom_call.1} parent=1 // loop_exit
      _
    %2389 = vsyncpa [#allocation3], 1
    %s2390 = scalar_lea.sflag [#allocation3], 1
    %2391 = vsyncpa %s2390, 1

</llo_original>
